<compile_context>
chip_gen: v7x
topology: tpu7x:2x2x1
jax: 0.10.0
libtpu: 0.0.40
codegen_flags: <defaults>
</compile_context>

<pallas_src>
import functools
import math

import jax
import jax.numpy as jnp
from jax.experimental import pallas as pl
from jax.experimental.pallas import tpu as pltpu

BN_EPS = 1e-5


def _round_up(x, m):
    return ((x + m - 1) // m) * m


@functools.lru_cache(maxsize=1)
def _vmem_limit_bytes():
    # Generation-dependent scoped-VMEM limit: ~3/4 of physical, capped at
    # 96 MiB (v5e/v6e: 96 of 128 MiB; v7x: 48 of 64 MiB). Fallback: 48 MiB.
    try:
        cap = int(pltpu.get_tpu_info().vmem_capacity_bytes)
        return min((cap * 3) // 4, 96 * 1024 * 1024)
    except Exception:
        return 48 * 1024 * 1024


def _apply_act(y, act):
    if act == "relu":
        return jnp.maximum(y, 0.0)
    if act == "tanh":
        return jnp.tanh(y)
    if act == "sigmoid":
        # numerically safe sigmoid (tanh routes to the EUP)
        return 0.5 * (jnp.tanh(0.5 * y) + 1.0)
    return y


# ----------------------------------------------------------------------------
# Fused matmul kernel:  y = act((x @ w) * scale + shift)
# Used for linear layers, 1x1 convs, tiny-Cin stem convs and the stride-2
# downsample convs (bf16 im2col).
# ----------------------------------------------------------------------------
def _make_mm_kernel_single(act):
    def kernel(x_ref, w_ref, s_ref, t_ref, o_ref):
        y = jnp.dot(x_ref[...], w_ref[...], preferred_element_type=jnp.float32)
        y = y * s_ref[...] + t_ref[...]
        o_ref[...] = _apply_act(y, act).astype(o_ref.dtype)
    return kernel


def _make_mm_kernel_multi(act):
    def kernel(x_ref, w_ref, s_ref, t_ref, o_ref, acc_ref):
        @pl.when(pl.program_id(2) == 0)
        def _init():
            acc_ref[...] = jnp.zeros_like(acc_ref)

        acc_ref[...] += jnp.dot(x_ref[...], w_ref[...],
                                preferred_element_type=jnp.float32)

        @pl.when(pl.program_id(2) == pl.num_programs(2) - 1)
        def _finalize():
            y = acc_ref[...] * s_ref[...] + t_ref[...]
            o_ref[...] = _apply_act(y, act).astype(o_ref.dtype)
    return kernel


@functools.partial(jax.jit, static_argnames=("act", "out_dtype"))
def fused_matmul(x, w, scale, shift, act="none", out_dtype=jnp.bfloat16):
    """y = act((x @ w) * scale + shift). x:(M,K) w:(K,N) scale/shift:(N,)."""
    M, K = x.shape
    N = w.shape[1]

    # per-layer tile selection
    Mp = _round_up(M, 8)
    tm = Mp if Mp <= 512 else 512
    Mp = _round_up(Mp, tm)
    Np = _round_up(N, 128)
    tn = 256 if (Np >= 256 and Np % 256 == 0) else 128
    Kp = _round_up(K, 128)
    if Kp <= 2048:
        tk = Kp
    else:
        tk = 512
        Kp = _round_up(Kp, tk)

    xp = jnp.pad(x.astype(jnp.bfloat16), ((0, Mp - M), (0, Kp - K)))
    wp = jnp.pad(w.astype(jnp.bfloat16), ((0, Kp - K), (0, Np - N)))
    sp = jnp.pad(scale.astype(jnp.float32).reshape(1, -1), ((0, 0), (0, Np - N)))
    tp = jnp.pad(shift.astype(jnp.float32).reshape(1, -1), ((0, 0), (0, Np - N)))

    if Kp == tk:
        # single-K fast path: no scratch accumulator, no init/finalize branches
        out = pl.pallas_call(
            _make_mm_kernel_single(act),
            out_shape=jax.ShapeDtypeStruct((Mp, Np), out_dtype),
            grid_spec=pltpu.PrefetchScalarGridSpec(
                num_scalar_prefetch=0,
                grid=(Mp // tm, Np // tn),
                in_specs=[
                    pl.BlockSpec((tm, Kp), lambda i, j: (i, 0)),
                    pl.BlockSpec((Kp, tn), lambda i, j: (0, j)),
                    pl.BlockSpec((1, tn), lambda i, j: (0, j)),
                    pl.BlockSpec((1, tn), lambda i, j: (0, j)),
                ],
                out_specs=pl.BlockSpec((tm, tn), lambda i, j: (i, j)),
            ),
            compiler_params=pltpu.CompilerParams(
                dimension_semantics=("parallel", "parallel"),
                vmem_limit_bytes=_vmem_limit_bytes()),
        )(xp, wp, sp, tp)
    else:
        out = pl.pallas_call(
            _make_mm_kernel_multi(act),
            out_shape=jax.ShapeDtypeStruct((Mp, Np), out_dtype),
            grid_spec=pltpu.PrefetchScalarGridSpec(
                num_scalar_prefetch=0,
                grid=(Mp // tm, Np // tn, Kp // tk),
                in_specs=[
                    pl.BlockSpec((tm, tk), lambda i, j, k: (i, k)),
                    pl.BlockSpec((tk, tn), lambda i, j, k: (k, j)),
                    pl.BlockSpec((1, tn), lambda i, j, k: (0, j)),
                    pl.BlockSpec((1, tn), lambda i, j, k: (0, j)),
                ],
                out_specs=pl.BlockSpec((tm, tn), lambda i, j, k: (i, j)),
                scratch_shapes=[pltpu.VMEM((tm, tn), jnp.float32)],
            ),
            compiler_params=pltpu.CompilerParams(
                dimension_semantics=("parallel", "parallel", "arbitrary"),
                vmem_limit_bytes=_vmem_limit_bytes()),
        )(xp, wp, sp, tp)
    return out[:M, :N]


# ----------------------------------------------------------------------------
# Fused, row-tiled stride-1 convolution kernel (no HBM im2col).
# Each grid step works on TR output rows; the input block holds the TR+KH-1
# padded rows (halo) flattened to ((TR+KH-1)*Wp + KW-1, Cin), so every (dy,dx)
# tap is a constant row shift.  A local f32 value accumulates the KH*KW taps,
# the BN scale/shift + activation epilogue is applied once and the result is
# stored as bf16 into a lane-dense (Cout padded to 128) output.
# Wp-wide rows include (KW-1) junk columns that are cropped in the wrapper.
# ----------------------------------------------------------------------------
def _make_conv_kernel(KH, KW, Wp, M, act):
    def kernel(x_ref, w_ref, s_ref, t_ref, o_ref):
        acc = None
        for dy in range(KH):
            for dx in range(KW):
                start = dy * Wp + dx
                patch = x_ref[0, start:start + M, :]          # (M, Cin) bf16
                d = jnp.dot(patch, w_ref[dy, dx],
                            preferred_element_type=jnp.float32)
                acc = d if acc is None else acc + d
        y = acc * s_ref[...] + t_ref[...]
        o_ref[0, :, :] = _apply_act(y, act).astype(o_ref.dtype)
    return kernel


def _pick_row_tile(Ho, Wp, target_rows=2048):
    """Largest divisor TR of Ho with TR*Wp <= target_rows (at least 1)."""
    best = 1
    for d in range(1, Ho + 1):
        if Ho % d == 0 and d * Wp <= target_rows:
            best = d
    return best


@functools.partial(jax.jit, static_argnames=("act",))
def conv_stride1_pallas(xpad, w, scale, shift, act="none"):
    """Stride-1 conv on an already spatially padded NHWC input.

    xpad: (N, Hp, Wp, Cin), w: (KH, KW, Cin, Cout), scale/shift: (Cout,)
    returns (N, Ho, Wo, Cout) bf16 with Ho = Hp-KH+1, Wo = Wp-KW+1.
    """
    N, Hp, Wp, Cin = xpad.shape
    KH, KW, _, Cout = w.shape
    Ho, Wo = Hp - KH + 1, Wp - KW + 1

    # lane-dense output channels
    Coutp = _round_up(Cout, 128)
    tn = 256 if Coutp % 256 == 0 else 128

    # row tiling with halo
    TR = _pick_row_tile(Ho, Wp)
    nt = Ho // TR
    halo = TR + KH - 1
    M = TR * Wp                         # output rows per tile (incl. junk cols)
    L = halo * Wp + (KW - 1)

    xb = xpad.astype(jnp.bfloat16)
    # gather halo'd row tiles: (N, nt, halo, Wp, Cin) -> (N*nt, halo*Wp, Cin)
    row_idx = (jnp.arange(nt) * TR)[:, None] + jnp.arange(halo)[None, :]
    xt = jnp.take(xb, row_idx.reshape(-1), axis=1)
    xt = xt.reshape(N, nt, halo, Wp, Cin).reshape(N * nt, halo * Wp, Cin)
    if KW > 1:
        xt = jnp.pad(xt, ((0, 0), (0, KW - 1), (0, 0)))

    wb = jnp.pad(w.astype(jnp.bfloat16),
                 ((0, 0), (0, 0), (0, 0), (0, Coutp - Cout)))
    sp = jnp.pad(scale.astype(jnp.float32).reshape(1, -1),
                 ((0, 0), (0, Coutp - Cout)))
    tp = jnp.pad(shift.astype(jnp.float32).reshape(1, -1),
                 ((0, 0), (0, Coutp - Cout)))

    NT = N * nt
    out = pl.pallas_call(
        _make_conv_kernel(KH, KW, Wp, M, act),
        out_shape=jax.ShapeDtypeStruct((NT, M, Coutp), jnp.bfloat16),
        grid_spec=pltpu.PrefetchScalarGridSpec(
            num_scalar_prefetch=0,
            # Cout tiles OUTER so the weight block stays resident across the
            # (many) consecutive row/batch tiles; both axes parallel (megacore).
            grid=(Coutp // tn, NT),
            in_specs=[
                pl.BlockSpec((1, L, Cin), lambda j, t: (t, 0, 0)),
                pl.BlockSpec((KH, KW, Cin, tn), lambda j, t: (0, 0, 0, j)),
                pl.BlockSpec((1, tn), lambda j, t: (0, j)),
                pl.BlockSpec((1, tn), lambda j, t: (0, j)),
            ],
            out_specs=pl.BlockSpec((1, M, tn), lambda j, t: (t, 0, j)),
        ),
        compiler_params=pltpu.CompilerParams(
            dimension_semantics=("parallel", "parallel"),
            vmem_limit_bytes=_vmem_limit_bytes()),
    )(xt, wb, sp, tp)

    out = out.reshape(N, nt, TR, Wp, Coutp).reshape(N, Ho, Wp, Coutp)
    return out[:, :, :Wo, :Cout]


# ----------------------------------------------------------------------------
# Conv wrappers
# ----------------------------------------------------------------------------
def conv2d_im2col(x, w, scale, shift, stride, padding, act):
    """bf16 im2col path: stride-2 downsample convs and tiny-Cin stem convs
    (folds the 9 taps into K = KH*KW*Cin for better MXU depth / lane use)."""
    N, H, W_, Cin = x.shape
    KH, KW, _, Cout = w.shape
    xb = x.astype(jnp.bfloat16)
    xp = jnp.pad(xb, ((0, 0), (padding, padding), (padding, padding), (0, 0)))
    Ho = (H + 2 * padding - KH) // stride + 1
    Wo = (W_ + 2 * padding - KW) // stride + 1
    cols = []
    for dy in range(KH):
        for dx in range(KW):
            cols.append(xp[:, dy:dy + Ho * stride:stride,
                           dx:dx + Wo * stride:stride, :])
    patches = jnp.concatenate(cols, axis=-1).reshape(N * Ho * Wo, KH * KW * Cin)
    y = fused_matmul(patches, w.reshape(KH * KW * Cin, Cout), scale, shift, act=act)
    return y.reshape(N, Ho, Wo, Cout)


def conv_bn_act(x, p, stride=1, act="none"):
    # eval-mode BN with fresh running stats (mean=0, var=1), fused as scale/shift
    scale = p["gamma"] * (1.0 / math.sqrt(1.0 + BN_EPS))
    shift = p["beta"] + p["b"] * scale
    KH = p["w"].shape[0]
    Cin = p["w"].shape[2]
    pad = KH // 2
    if stride == 1 and Cin >= 32:
        xpad = jnp.pad(x, ((0, 0), (pad, pad), (pad, pad), (0, 0)))
        return conv_stride1_pallas(xpad, p["w"], scale, shift, act=act)
    return conv2d_im2col(x, p["w"], scale, shift, stride=stride, padding=pad, act=act)


def conv1x1_act(x, p, act="none"):
    N, H, W_, Cin = x.shape
    Cout = p["w"].shape[-1]
    y = fused_matmul(x.reshape(N * H * W_, Cin), p["w"].reshape(Cin, Cout),
                     jnp.ones((Cout,), jnp.float32), p["b"], act=act)
    return y.reshape(N, H, W_, Cout)


def conv_transpose2d(x, p, act="none"):
    """ConvTranspose2d(k=3, s=2, p=1, output_padding=1) via sub-pixel
    decomposition, fused into ONE Pallas call: the 4 phases become a single
    2x2 conv over x padded bottom/right, with the per-phase weights
    concatenated along Cout (lane-dense), then interleaved with a reshape.
    TODO(synk): loading real PyTorch ConvTranspose weights would additionally
    require a 180-degree spatial flip and an in/out channel swap."""
    N, H, W_, Cin = x.shape
    w = p["w"]
    Cout = w.shape[-1]
    z = jnp.zeros_like(w[0, 0])
    # phase (py, px) taps over x padded bottom/right by 1
    w00 = jnp.stack([jnp.stack([w[1, 1], z], 0), jnp.stack([z, z], 0)], 0)
    w01 = jnp.stack([jnp.stack([w[1, 0], w[1, 2]], 0), jnp.stack([z, z], 0)], 0)
    w10 = jnp.stack([jnp.stack([w[0, 1], z], 0), jnp.stack([w[2, 1], z], 0)], 0)
    w11 = w[::2, ::2]
    wcat = jnp.concatenate([w00, w01, w10, w11], axis=-1)   # (2,2,Cin,4*Cout)
    bias = jnp.tile(p["b"], 4)
    ones = jnp.ones((4 * Cout,), jnp.float32)
    xpad = jnp.pad(x, ((0, 0), (0, 1), (0, 1), (0, 0)))
    y = conv_stride1_pallas(xpad, wcat, ones, bias, act=act)  # (N,H,W,4*Cout)
    y = y.reshape(N, H, W_, 2, 2, Cout).transpose(0, 1, 3, 2, 4, 5)
    return y.reshape(N, 2 * H, 2 * W_, Cout)


def avg_pool(x, k):
    N, H, W_, C = x.shape
    y = x.reshape(N, H // k, k, W_ // k, k, C).astype(jnp.float32).mean(axis=(2, 4))
    return y.astype(x.dtype)


# ----------------------------------------------------------------------------
# Embedder
# ----------------------------------------------------------------------------
def embedder(x, P):
    b = x.shape[0]
    x = avg_pool(conv_bn_act(x, P["c1"]), 2)
    x = avg_pool(conv_bn_act(x, P["c2"]), 2)
    x = avg_pool(conv_bn_act(x, P["c3"]), 2)
    x = conv_bn_act(x, P["c4"])
    g = x.shape[1]
    # original: reshape(b, 16, 1024) (assumes 256x256 input); parameterized here
    return jnp.transpose(x, (0, 3, 1, 2)).reshape(b, 16, g * g)


# ----------------------------------------------------------------------------
# Transformer stand-in (cross-attention block, 4 heads).
# TODO(synk): the `Transformer` class source was not provided; this is a
# deterministic stand-in producing 16 keypoints per image.
# ----------------------------------------------------------------------------
def _linear(x, w, b, act="none"):
    shp = x.shape
    y = fused_matmul(x.reshape(-1, shp[-1]), w,
                     jnp.ones((w.shape[1],), jnp.float32), b, act=act)
    return y.reshape(shp[:-1] + (w.shape[1],))


def _cross_block(q_tok, kv_tok, P, n_heads=4):
    b, n, d = q_tok.shape
    dh = d // n_heads
    q = _linear(q_tok, P["wq"], P["bq"]).reshape(b, n, n_heads, dh).transpose(0, 2, 1, 3)
    k = _linear(kv_tok, P["wk"], P["bk"]).reshape(b, n, n_heads, dh).transpose(0, 2, 1, 3)
    v = _linear(kv_tok, P["wv"], P["bv"]).reshape(b, n, n_heads, dh).transpose(0, 2, 1, 3)
    scores = jnp.einsum("bhnd,bhmd->bhnm", q, k,
                        preferred_element_type=jnp.float32) / math.sqrt(dh)
    attn = jax.nn.softmax(scores, axis=-1).astype(q.dtype)
    ctx = jnp.einsum("bhnm,bhmd->bhnd", attn, v).transpose(0, 2, 1, 3).reshape(b, n, d)
    x = q_tok + _linear(ctx, P["wo"], P["bo"])
    x = x + _linear(_linear(x, P["w1"], P["b1"], act="relu"), P["w2"], P["b2"])
    return x


def transformer(em_s, em_d, P, coord_max):
    ts = em_s.transpose(0, 2, 1)                     # (b, G*G, 16) tokens
    td = em_d.transpose(0, 2, 1)
    fs = _cross_block(ts, td, P).transpose(0, 2, 1)  # (b, 16, G*G)
    fd = _cross_block(td, ts, P).transpose(0, 2, 1)
    b, K, F = fs.shape
    ones2 = jnp.ones((2,), jnp.float32)
    kp_s = coord_max * fused_matmul(fs.reshape(b * K, F), P["wkp"], ones2,
                                    P["bkp"], act="sigmoid",
                                    out_dtype=jnp.float32).reshape(b, K, 2)
    kp_d = coord_max * fused_matmul(fd.reshape(b * K, F), P["wkp"], ones2,
                                    P["bkp"], act="sigmoid",
                                    out_dtype=jnp.float32).reshape(b, K, 2)
    return kp_s, kp_d


# ----------------------------------------------------------------------------
# batch_mls : Moving-Least-Squares affine deformation.
# TODO(synk): `batch_mls` source was not provided; standard MLS-affine
# implementation (tiny: GxG grid, 16 control points, 2x2 solves) in plain JAX.
# ----------------------------------------------------------------------------
def batch_mls(p, q, size):
    b, K, _ = p.shape
    ys, xs = jnp.meshgrid(jnp.arange(size), jnp.arange(size), indexing="ij")
    v = jnp.stack([xs, ys], -1).reshape(-1, 2).astype(jnp.float32)   # (HW,2)
    diff = p[:, None, :, :] - v[None, :, None, :]                    # (b,HW,K,2)
    W = 1.0 / (jnp.sum(diff * diff, -1) + 1e-8)                      # (b,HW,K)
    Wsum = W.sum(-1, keepdims=True)
    pstar = jnp.einsum("bnk,bkd->bnd", W, p) / Wsum
    qstar = jnp.einsum("bnk,bkd->bnd", W, q) / Wsum
    phat = p[:, None] - pstar[:, :, None]                            # (b,HW,K,2)
    qhat = q[:, None] - qstar[:, :, None]
    A = jnp.einsum("bnk,bnki,bnkj->bnij", W, phat, phat) + 1e-6 * jnp.eye(2)
    Bm = jnp.einsum("bnk,bnki,bnkj->bnij", W, phat, qhat)
    Mmat = jnp.linalg.solve(A, Bm)                                   # (b,HW,2,2)
    f = jnp.einsum("bni,bnij->bnj", v[None] - pstar, Mmat) + qstar   # (b,HW,2)
    me = f.reshape(b, size, size, 2).transpose(0, 3, 1, 2)           # (b,2,G,G)
    return me, W, Mmat, phat, qhat


# ----------------------------------------------------------------------------
# WarpingFieldGenterator.forward  (AvgPool2d(8) + Warp2d grid_sample).
# The original mixes an align_corners=True normalization (Warp2d) with the
# F.grid_sample default (align_corners=False); reproduced faithfully here.
# TODO(synk): data-dependent bilinear gather kept in plain JAX.
# ----------------------------------------------------------------------------
def _grid_sample_bilinear(img, grid):
    img = img.astype(jnp.float32)
    b, Hi, Wi, C = img.shape
    _, Ho, Wo, _ = grid.shape
    gx = (grid[..., 0] + 1.0) * Wi / 2.0 - 0.5
    gy = (grid[..., 1] + 1.0) * Hi / 2.0 - 0.5
    x0 = jnp.floor(gx); y0 = jnp.floor(gy)
    x1 = x0 + 1.0;      y1 = y0 + 1.0
    wx1 = gx - x0; wx0 = 1.0 - wx1
    wy1 = gy - y0; wy0 = 1.0 - wy1
    flat = img.reshape(b, Hi * Wi, C)

    def gather(ix, iy):
        valid = ((ix >= 0) & (ix < Wi) & (iy >= 0) & (iy < Hi)).astype(img.dtype)
        ixc = jnp.clip(ix, 0, Wi - 1).astype(jnp.int32)
        iyc = jnp.clip(iy, 0, Hi - 1).astype(jnp.int32)
        idx = (iyc * Wi + ixc).reshape(b, -1, 1)
        vals = jnp.take_along_axis(flat, idx, axis=1).reshape(b, Ho, Wo, C)
        return vals * valid[..., None]

    return (gather(x0, y0) * (wx0 * wy0)[..., None] +
            gather(x1, y0) * (wx1 * wy0)[..., None] +
            gather(x0, y1) * (wx0 * wy1)[..., None] +
            gather(x1, y1) * (wx1 * wy1)[..., None])


def warping_field_generator(x1_nhwc, me, img_size):
    img = avg_pool(x1_nhwc, 8)                                   # (b,G,G,3)
    vgrid = 2.0 * me / (img_size - 1) - 1.0                      # (b,2,G,G)
    vgrid = vgrid.transpose(0, 2, 3, 1)                          # (b,G,G,2)
    return _grid_sample_bilinear(img, vgrid)                     # f32


# ----------------------------------------------------------------------------
# Unet
# ----------------------------------------------------------------------------
def double_conv(x, p):
    x = conv_bn_act(x, p["c1"], act="relu")
    x = conv_bn_act(x, p["c2"], act="relu")
    return x


def double_conv_down(x, p):
    out = double_conv(x, p["dc"])
    down = conv_bn_act(out, p["down"], stride=2, act="relu")
    return out, down


def upblock(x, skip, p):
    x = jnp.concatenate([x, skip], axis=-1)
    x = double_conv(x, p["dc"])
    return conv_transpose2d(x, p["up"], act="none")


def unet(x, warp, P):
    f1, x = double_conv_down(x, P["enc1"])
    f2, x = double_conv_down(x, P["enc2"])
    f3, x = double_conv_down(x, P["enc3"])
    x = double_conv(x, P["enc4"])
    x = upblock(x, warp, P["dec1"])
    x = upblock(x, f3, P["dec2"])
    x = upblock(x, f2, P["dec3"])
    x = jnp.concatenate([x, f1], axis=-1)
    x = double_conv(x, P["dec4"])
    x = conv1x1_act(x, P["last"], act="tanh")
    return x


# ----------------------------------------------------------------------------
# Deterministic parameter construction
# ----------------------------------------------------------------------------
class ParamInit:
    def __init__(self, seed=42):
        self._key = jax.random.PRNGKey(seed)

    def _next(self):
        self._key, k = jax.random.split(self._key)
        return k

    def w(self, shape, fan_in):
        return (jax.random.normal(self._next(), shape, jnp.float32)
                / math.sqrt(float(fan_in)))

    def b(self, n):
        return 0.01 * jax.random.normal(self._next(), (n,), jnp.float32)


def p_conv_bn(init, cin, cout, k=3):
    return dict(w=init.w((k, k, cin, cout), k * k * cin), b=init.b(cout),
                gamma=jnp.ones((cout,), jnp.float32),
                beta=jnp.zeros((cout,), jnp.float32))


def p_conv(init, cin, cout, k=3):
    return dict(w=init.w((k, k, cin, cout), k * k * cin), b=init.b(cout))


def p_dc(init, cin, cout):
    return dict(c1=p_conv_bn(init, cin, cout), c2=p_conv_bn(init, cout, cout))


def make_embedder_params(init):
    return dict(c1=p_conv_bn(init, 3, 8), c2=p_conv_bn(init, 8, 8),
                c3=p_conv_bn(init, 8, 16), c4=p_conv_bn(init, 16, 16))


def make_transformer_params(init, d=16, ff=1024, kp_in=16):
    return dict(wq=init.w((d, d), d), bq=init.b(d),
                wk=init.w((d, d), d), bk=init.b(d),
                wv=init.w((d, d), d), bv=init.b(d),
                wo=init.w((d, d), d), bo=init.b(d),
                w1=init.w((d, ff), d), b1=init.b(ff),
                w2=init.w((ff, d), ff), b2=init.b(d),
                wkp=init.w((kp_in, 2), kp_in), bkp=init.b(2))


def make_unet_params(init, in_ch=3, warp_ch=3):
    # TODO(synk): original declares Upblock(529, 512, 256) but the tensor that
    # actually arrives is 512 + warp_ch(=3) channels; built with the real count.
    return dict(
        enc1=dict(dc=p_dc(init, in_ch, 64), down=p_conv_bn(init, 64, 64)),
        enc2=dict(dc=p_dc(init, 64, 128), down=p_conv_bn(init, 128, 128)),
        enc3=dict(dc=p_dc(init, 128, 256), down=p_conv_bn(init, 256, 256)),
        enc4=p_dc(init, 256, 512),
        dec1=dict(dc=p_dc(init, 512 + warp_ch, 512), up=p_conv(init, 512, 256)),
        dec2=dict(dc=p_dc(init, 256 + 256, 256), up=p_conv(init, 256, 128)),
        dec3=dict(dc=p_dc(init, 128 + 128, 128), up=p_conv(init, 128, 64)),
        dec4=p_dc(init, 64 + 64, 64),
        last=p_conv(init, 64, 3, k=1),
    )


# ----------------------------------------------------------------------------
# Generator forward
# ----------------------------------------------------------------------------
def generator_forward(x1, x2, P):
    """x1, x2: PyTorch-convention NCHW (b, 3, S, S) with S a multiple of 8."""
    B, _, S, _ = x1.shape
    G = S // 8
    x1n = jnp.transpose(x1, (0, 2, 3, 1)).astype(jnp.bfloat16)
    x2n = jnp.transpose(x2, (0, 2, 3, 1)).astype(jnp.bfloat16)

    # batch both embedder passes into one call (helps v7x megacore / pipelining)
    em = embedder(jnp.concatenate([x1n, x2n], axis=0), P["emb"])
    em_s, em_d = em[:B], em[B:]

    kp_s, kp_d = transformer(em_s, em_d, P["trf"], coord_max=float(G - 1))
    me, W, M, phat, qhat = batch_mls(kp_s, kp_d, size=G)
    warp_f32 = warping_field_generator(x1n, me, img_size=G)   # (b,G,G,3) f32
    out = unet(x1n, warp_f32.astype(jnp.bfloat16), P["unet"]) # (b,S,S,3) bf16
    return (jnp.transpose(out, (0, 3, 1, 2)).astype(jnp.float32),   # NCHW f32
            jnp.transpose(warp_f32, (0, 3, 1, 2)).astype(jnp.float32),
            W, M, phat, qhat)


if __name__ == "__main__":
    B, S = 2, 32          # small test shapes; original module hard-codes S=256
    G = S // 8
    k1, k2 = jax.random.split(jax.random.PRNGKey(0))
    x1 = jax.random.normal(k1, (B, 3, S, S), jnp.float32)
    x2 = jax.random.normal(k2, (B, 3, S, S), jnp.float32)

    init = ParamInit(seed=42)
    params = dict(emb=make_embedder_params(init),
                  trf=make_transformer_params(init, kp_in=G * G),
                  unet=make_unet_params(init))

    out, warp, W, M, phat, qhat = generator_forward(x1, x2, params)
    jax.block_until_ready((out, warp, W, M, phat, qhat))

    assert out.shape == (B, 3, S, S)
    assert warp.shape == (B, 3, G, G)
    assert W.shape == (B, G * G, 16)
    assert M.shape == (B, G * G, 2, 2)
    assert phat.shape == (B, G * G, 16, 2) and qhat.shape == (B, G * G, 16, 2)
    assert bool(jnp.all(jnp.isfinite(out)))
    print("KERNEL_OK")
</pallas_src>

<mosaic_0001>
module attributes {stable_mosaic.version = 11 : i64} {
  func.func @kernel(%arg0: i32, %arg1: i32, %arg2: memref<512x128xbf16, #tpu.memory_space<vmem>>, %arg3: memref<128x128xbf16, #tpu.memory_space<vmem>>, %arg4: memref<1x128xf32, #tpu.memory_space<vmem>>, %arg5: memref<1x128xf32, #tpu.memory_space<vmem>>, %arg6: memref<512x128xbf16, #tpu.memory_space<vmem>>) attributes {dimension_semantics = [#tpu.dimension_semantics<parallel>, #tpu.dimension_semantics<parallel>], iteration_bounds = array<i64: 8, 1>, scalar_prefetch = 0 : i64, scratch_operands = 0 : i64, tpu.core_type = #tpu.core_type<tc>, window_params = [{transform_indices = @transform_0, window_bounds = array<i64: 512, 128>}, {transform_indices = @transform_1, window_bounds = array<i64: 128, 128>}, {transform_indices = @transform_2, window_bounds = array<i64: 1, 128>}, {transform_indices = @transform_3, window_bounds = array<i64: 1, 128>}, {transform_indices = @transform_4, window_bounds = array<i64: 512, 128>}]} {
    %c0 = arith.constant 0 : index
    %c0_0 = arith.constant 0 : index
    %0 = vector.load %arg2[%c0, %c0_0] : memref<512x128xbf16, #tpu.memory_space<vmem>>, vector<512x128xbf16>
    %c0_1 = arith.constant 0 : index
    %c0_2 = arith.constant 0 : index
    %1 = vector.load %arg3[%c0_1, %c0_2] : memref<128x128xbf16, #tpu.memory_space<vmem>>, vector<128x128xbf16>
    %cst = arith.constant dense<0.000000e+00> : vector<512x128xf32>
    %2 = tpu.matmul %0, %1, %cst {dimension_numbers = #tpu.dot_dimension_numbers<[1], [0], [0], [1], [0, 0, 1, 1], [], []>} : vector<512x128xbf16>, vector<128x128xbf16>, vector<512x128xf32> -> vector<512x128xf32>
    %c0_3 = arith.constant 0 : index
    %c0_4 = arith.constant 0 : index
    %3 = vector.load %arg4[%c0_3, %c0_4] : memref<1x128xf32, #tpu.memory_space<vmem>>, vector<1x128xf32>
    %4 = vector.broadcast %3 : vector<1x128xf32> to vector<512x128xf32>
    %5 = arith.mulf %2, %4 : vector<512x128xf32>
    %c0_5 = arith.constant 0 : index
    %c0_6 = arith.constant 0 : index
    %6 = vector.load %arg5[%c0_5, %c0_6] : memref<1x128xf32, #tpu.memory_space<vmem>>, vector<1x128xf32>
    %7 = vector.broadcast %6 : vector<1x128xf32> to vector<512x128xf32>
    %8 = arith.addf %5, %7 : vector<512x128xf32>
    %9 = arith.truncf %8 : vector<512x128xf32> to vector<512x128xbf16>
    %c0_7 = arith.constant 0 : index
    %c0_8 = arith.constant 0 : index
    %10 = vector.load %arg6[%c0_7, %c0_8] : memref<512x128xbf16, #tpu.memory_space<vmem>>, vector<512x128xbf16>
    tpu.vector_store %arg6[%c0_7, %c0_8], %9 {strides = array<i32>} : memref<512x128xbf16, #tpu.memory_space<vmem>>, vector<512x128xbf16>,
    return
  }
  func.func @transform_0(%arg0: i32, %arg1: i32) -> (i32, i32) {
    %c0_i32 = arith.constant 0 : i32
    %c0_i32_0 = arith.constant 0 : i32
    return %arg0, %c0_i32 : i32, i32
  }
  func.func @transform_1(%arg0: i32, %arg1: i32) -> (i32, i32) {
    %c0_i32 = arith.constant 0 : i32
    %c0_i32_0 = arith.constant 0 : i32
    return %c0_i32, %arg1 : i32, i32
  }
  func.func @transform_2(%arg0: i32, %arg1: i32) -> (i32, i32) {
    %c0_i32 = arith.constant 0 : i32
    %c0_i32_0 = arith.constant 0 : i32
    return %c0_i32, %arg1 : i32, i32
  }
  func.func @transform_3(%arg0: i32, %arg1: i32) -> (i32, i32) {
    %c0_i32 = arith.constant 0 : i32
    %c0_i32_0 = arith.constant 0 : i32
    return %c0_i32, %arg1 : i32, i32
  }
  func.func @transform_4(%arg0: i32, %arg1: i32) -> (i32, i32) {
    %c0_i32 = arith.constant 0 : i32
    return %arg0, %arg1 : i32, i32
  }
}

</mosaic_0001>

<llo_original>
// kernel: fused_matmul.1
$region0: #{fused_matmul.1}
  #allocation0 [shape = 'u32[]', space=smem, size = 0x4, offset = 0x4, fixed_abs, tag = 'smem constant byte address 0x4 - core index']
  #allocation1 [shape = 'u32[144,128]{1,0:T(1,128)}', space=vmem, size = 0x12000, scoped, tag = 'internal scratch']
  %s0 = inlined_call_operand.vmem [shape: bf16[4096,128], index: 0, kind: input, shape index: {}]
  %s1 = inlined_call_operand.vmem [shape: bf16[128,128], index: 1, kind: input, shape index: {}]
  %s2 = inlined_call_operand.vmem [shape: f32[1,128], index: 2, kind: input, shape index: {}]
  %s3 = inlined_call_operand.vmem [shape: f32[1,128], index: 3, kind: input, shape index: {}]
  %s4 = inlined_call_operand.vmem [shape: bf16[4096,128], index: 4, kind: output, shape index: {}]
  %s5 = sld [smem:[#allocation0]]
  $region49: #{fused_matmul.1} parent=0
    _
  %s7 = ssub.s32 1, %s5
  %s8 = scalar_select 0, %s7, %s5
  loop: start=0, step=1, limit=10
  $region2: #{fused_matmul.1} parent=0 // loop_pre_header
    _
  $region3: #{fused_matmul.1} parent=0 // loop_header
    %s10 = sphi 0, %s14
    %p11 = scmp.ge.s32.totalorder %s10, 10
    %s17 = sphi 0, %s29
    %s18 = sphi 0, %s25
    %s19 = sphi 0, %s17
    %s20 = sphi 0, %s18
    %s21 = sphi 0, %s19
    %s22 = sphi 0, %s20
    %s32 = sphi 0, %s34
    %s35 = sphi 0, %s32
    %s36 = sphi 0, %s35
    %s52 = sphi 0, %s36
    %s58 = sphi 0, %s60
    %s61 = sphi 0, %s58
    %s62 = sphi 0, %s61
    %s78 = sphi 0, %s62
    %s84 = sphi 0, %s86
    %s87 = sphi 0, %s84
    %s88 = sphi 0, %s87
    %s104 = sphi 0, %s88
    %s110 = sphi 0, %s112
    %s113 = sphi 0, %s110
    %s114 = sphi 0, %s113
    %s130 = sphi 0, %s114
    %s138 = sphi 0, %s140
    %s141 = sphi 0, %s138
    %s142 = sphi 0, %s141
    %s158 = sphi 0, %s142
  $region4: #{fused_matmul.1} parent=0 // loop_header_branch
    %13 = sbr.rel (%p11) target = $region8
  $region5: #{fused_matmul.1} parent=0 // loop_body
    %s15 = ssub.s32 %s10, 1
    %s16 = ssub.s32 %s10, 2
    %s23 = sadd.s32 1, %s18
    %p24 = scmp.ge.s32.totalorder %s23, 1
    %s25 = scalar_select %p24, 0, %s23
    %s26 = sadd.s32 1, %s17
    %s27 = scalar_select %p24, %s26, %s17
    %p28 = scmp.ge.s32.totalorder %s27, 8
    %s29 = scalar_select %p28, 0, %s27
    %s30 = ssub.s32 %s17, %s29
    %p31 = scmp.eq.s32.totalorder %s30, 0
    %s33 = sadd.s32 %s32, 1
    %s34 = scalar_select %p31, %s32, %s33
    %p37 = pneg %p31
    %p38 = scmp.eq.s32.totalorder %s10, 7
    %p39 = por %p37, %p38
    %p40 = scmp.ne.s32.totalorder %s32, %s35
    %p41 = scmp.eq.s32.totalorder %s10, 0
    %p42 = por %p40, %p41
    %p43 = scmp.ne.s32.totalorder %s32, %s35
    %p44 = scmp.eq.s32.totalorder %s15, 7
    %p45 = por %p43, %p44
    %p46 = scmp.ne.s32.totalorder %s35, %s36
    %p47 = scmp.eq.s32.totalorder %s15, 0
    %p48 = por %p46, %p47
    %p49 = scmp.ne.s32.totalorder %s35, %s36
    %p50 = scmp.eq.s32.totalorder %s16, 7
    %p51 = por %p49, %p50
    %p53 = scmp.ne.s32.totalorder %s36, %s52
    %p54 = scmp.eq.s32.totalorder %s16, 0
    %p55 = por %p53, %p54
    %s56 = ssub.s32 %s18, %s25
    %p57 = scmp.eq.s32.totalorder %s56, 0
    %s59 = sadd.s32 %s58, 1
    %s60 = scalar_select %p57, %s58, %s59
    %p63 = pneg %p57
    %p64 = scmp.eq.s32.totalorder %s10, 7
    %p65 = por %p63, %p64
    %p66 = scmp.ne.s32.totalorder %s58, %s61
    %p67 = scmp.eq.s32.totalorder %s10, 0
    %p68 = por %p66, %p67
    %p69 = scmp.ne.s32.totalorder %s58, %s61
    %p70 = scmp.eq.s32.totalorder %s15, 7
    %p71 = por %p69, %p70
    %p72 = scmp.ne.s32.totalorder %s61, %s62
    %p73 = scmp.eq.s32.totalorder %s15, 0
    %p74 = por %p72, %p73
    %p75 = scmp.ne.s32.totalorder %s61, %s62
    %p76 = scmp.eq.s32.totalorder %s16, 7
    %p77 = por %p75, %p76
    %p79 = scmp.ne.s32.totalorder %s62, %s78
    %p80 = scmp.eq.s32.totalorder %s16, 0
    %p81 = por %p79, %p80
    %s82 = ssub.s32 %s18, %s25
    %p83 = scmp.eq.s32.totalorder %s82, 0
    %s85 = sadd.s32 %s84, 1
    %s86 = scalar_select %p83, %s84, %s85
    %p89 = pneg %p83
    %p90 = scmp.eq.s32.totalorder %s10, 7
    %p91 = por %p89, %p90
    %p92 = scmp.ne.s32.totalorder %s84, %s87
    %p93 = scmp.eq.s32.totalorder %s10, 0
    %p94 = por %p92, %p93
    %p95 = scmp.ne.s32.totalorder %s84, %s87
    %p96 = scmp.eq.s32.totalorder %s15, 7
    %p97 = por %p95, %p96
    %p98 = scmp.ne.s32.totalorder %s87, %s88
    %p99 = scmp.eq.s32.totalorder %s15, 0
    %p100 = por %p98, %p99
    %p101 = scmp.ne.s32.totalorder %s87, %s88
    %p102 = scmp.eq.s32.totalorder %s16, 7
    %p103 = por %p101, %p102
    %p105 = scmp.ne.s32.totalorder %s88, %s104
    %p106 = scmp.eq.s32.totalorder %s16, 0
    %p107 = por %p105, %p106
    %s108 = ssub.s32 %s18, %s25
    %p109 = scmp.eq.s32.totalorder %s108, 0
    %s111 = sadd.s32 %s110, 1
    %s112 = scalar_select %p109, %s110, %s111
    %p115 = pneg %p109
    %p116 = scmp.eq.s32.totalorder %s10, 7
    %p117 = por %p115, %p116
    %p118 = scmp.ne.s32.totalorder %s110, %s113
    %p119 = scmp.eq.s32.totalorder %s10, 0
    %p120 = por %p118, %p119
    %p121 = scmp.ne.s32.totalorder %s110, %s113
    %p122 = scmp.eq.s32.totalorder %s15, 7
    %p123 = por %p121, %p122
    %p124 = scmp.ne.s32.totalorder %s113, %s114
    %p125 = scmp.eq.s32.totalorder %s15, 0
    %p126 = por %p124, %p125
    %p127 = scmp.ne.s32.totalorder %s113, %s114
    %p128 = scmp.eq.s32.totalorder %s16, 7
    %p129 = por %p127, %p128
    %p131 = scmp.ne.s32.totalorder %s114, %s130
    %p132 = scmp.eq.s32.totalorder %s16, 0
    %p133 = por %p131, %p132
    %s134 = ssub.s32 %s17, %s29
    %s135 = ssub.s32 %s18, %s25
    %s136 = sor.u32 %s134, %s135
    %p137 = scmp.eq.s32.totalorder %s136, 0
    %s139 = sadd.s32 %s138, 1
    %s140 = scalar_select %p137, %s138, %s139
    %p143 = pneg %p137
    %p144 = scmp.eq.s32.totalorder %s10, 7
    %p145 = por %p143, %p144
    %p146 = scmp.ne.s32.totalorder %s138, %s141
    %p147 = scmp.eq.s32.totalorder %s10, 0
    %p148 = por %p146, %p147
    %p149 = scmp.ne.s32.totalorder %s138, %s141
    %p150 = scmp.eq.s32.totalorder %s15, 7
    %p151 = por %p149, %p150
    %p152 = scmp.ne.s32.totalorder %s141, %s142
    %p153 = scmp.eq.s32.totalorder %s15, 0
    %p154 = por %p152, %p153
    %p155 = scmp.ne.s32.totalorder %s141, %s142
    %p156 = scmp.eq.s32.totalorder %s16, 7
    %p157 = por %p155, %p156
    %p159 = scmp.ne.s32.totalorder %s142, %s158
    %p160 = scmp.eq.s32.totalorder %s16, 0
    %p161 = por %p159, %p160
    %p162 = scmp.le.s32.totalorder 1, %s10
    %p163 = scmp.lt.s32.totalorder %s10, 9
    %p164 = pnand %p162, %p163
    %p165 = pneg %p164
    // Predicated region
    $region9: #{fused_matmul.1} parent=5 // pred_check
      _
    $region10: #{fused_matmul.1} parent=5 // pred_check_branch
      %167 = sbr.rel (%p164) target = $region12
    $region11: #{fused_matmul.1} parent=5 // pred_region
      %s168 = ssub.s32 %s10, 1
      // Predicated region
      $region13: #{fused_matmul.1} parent=11 // pred_check
        %p169 = pneg %p74
      $region14: #{fused_matmul.1} parent=11 // pred_check_branch
        %171 = sbr.rel (%p169) target = $region16
      $region15: #{fused_matmul.1} parent=11 // pred_region
        %p172 = scmp.lt.s32.totalorder %s20, 0
        %s173 = scalar_select %p172, %s20, 0
        %s174 = smul.addr %s173, 4
        %s175 = scalar_lea.vmem %s1, %s174
      $region16: #{fused_matmul.1} parent=11 // pred_fallthru
        _
      // Predicated region
      $region17: #{fused_matmul.1} parent=11 // pred_check
        %p176 = pneg %p100
      $region18: #{fused_matmul.1} parent=11 // pred_check_branch
        %178 = sbr.rel (%p176) target = $region20
      $region19: #{fused_matmul.1} parent=11 // pred_region
        %p179 = scmp.lt.s32.totalorder %s20, 0
        %s180 = scalar_select %p179, %s20, 0
        %s181 = scalar_lea.vmem %s2, %s180
      $region20: #{fused_matmul.1} parent=11 // pred_fallthru
        _
      // Predicated region
      $region21: #{fused_matmul.1} parent=11 // pred_check
        %p182 = pneg %p126
      $region22: #{fused_matmul.1} parent=11 // pred_check_branch
        %184 = sbr.rel (%p182) target = $region24
      $region23: #{fused_matmul.1} parent=11 // pred_region
        %p185 = scmp.lt.s32.totalorder %s20, 0
        %s186 = scalar_select %p185, %s20, 0
        %s187 = scalar_lea.vmem %s3, %s186
      $region24: #{fused_matmul.1} parent=11 // pred_fallthru
        _
    $region12: #{fused_matmul.1} parent=5 // pred_fallthru
      _
    %p188 = scmp.lt.s32.totalorder %s10, 8
    // Predicated region
    $region25: #{fused_matmul.1} parent=5 // pred_check
      %p189 = pneg %p188
    $region26: #{fused_matmul.1} parent=5 // pred_check_branch
      %191 = sbr.rel (%p189) target = $region28
    $region27: #{fused_matmul.1} parent=5 // pred_region
      // Predicated region
      $region29: #{fused_matmul.1} parent=27 // pred_check
        %p192 = pneg %p42
      $region30: #{fused_matmul.1} parent=27 // pred_check_branch
        %194 = sbr.rel (%p192) target = $region32
      $region31: #{fused_matmul.1} parent=27 // pred_region
        %s195 = smul.u32 64, %s17
        %p196 = scmp.lt.s32.totalorder %s195, 511
        %s197 = scalar_select %p196, %s195, 511
        %s198 = smul.addr %s197, 4
        %s199 = scalar_lea.vmem %s0, %s198
        %s200 = smul.u32 64, %s17
      $region32: #{fused_matmul.1} parent=27 // pred_fallthru
        _
    $region28: #{fused_matmul.1} parent=5 // pred_fallthru
      _
    %p201 = scmp.le.s32.totalorder 1, %s10
    %p202 = scmp.lt.s32.totalorder %s10, 9
    %p203 = pnand %p201, %p202
    %p204 = pneg %p203
    // Predicated region
    $region33: #{fused_matmul.1} parent=5 // pred_check
      _
    $region34: #{fused_matmul.1} parent=5 // pred_check_branch
      %206 = sbr.rel (%p203) target = $region36
    $region35: #{fused_matmul.1} parent=5 // pred_region
      %s207 = ssub.s32 %s10, 1
      %s208 = smul.u32 64, %s19
      %p209 = scmp.lt.s32.totalorder %s208, 511
      %s210 = scalar_select %p209, %s208, 511
      %s211 = smul.addr %s210, 4
      %s212 = scalar_lea.vmem %s0, %s211
      %p213 = pneg %p48
      %p214 = pneg %p45
      %p215 = scmp.lt.s32.totalorder %s20, 0
      %s216 = scalar_select %p215, %s20, 0
      %s217 = smul.addr %s216, 4
      %s218 = scalar_lea.vmem %s1, %s217
      %p219 = pneg %p74
      %p220 = pneg %p71
      %p221 = scmp.lt.s32.totalorder %s20, 0
      %s222 = scalar_select %p221, %s20, 0
      %s223 = scalar_lea.vmem %s2, %s222
      %p224 = pneg %p100
      %p225 = pneg %p97
      %p226 = scmp.lt.s32.totalorder %s20, 0
      %s227 = scalar_select %p226, %s20, 0
      %s228 = scalar_lea.vmem %s3, %s227
      %p229 = pneg %p126
      %p230 = pneg %p123
      %p231 = pneg %p154
      %p232 = pneg %p151
      %s233 = smul.u32 64, %s19
      %p234 = scmp.lt.s32.totalorder %s233, 511
      %s235 = scalar_select %p234, %s233, 511
      %p236 = scmp.lt.s32.totalorder %s20, 0
      %s237 = scalar_select %p236, %s20, 0
      %s238 = sadd.s32 %s237, %s235
      %s239 = smul.addr %s238, 4
      %s240 = scalar_lea.vmem %s4, %s239
      %s241 = smul.u32 64, %s19
      %p242 = scmp.lt.s32.totalorder %s241, 511
      %s243 = scalar_select %p242, %s241, 511
      %s244 = smul.addr %s243, 4
      %s245 = scalar_lea.vmem %s0, %s244
      %s246 = smul.u32 64, %s19
      %p247 = scmp.lt.s32.totalorder %s20, 0
      %s248 = scalar_select %p247, %s20, 0
      %s249 = smul.addr %s248, 4
      %s250 = scalar_lea.vmem %s1, %s249
      %p251 = scmp.lt.s32.totalorder %s20, 0
      %s252 = scalar_select %p251, %s20, 0
      %s253 = scalar_lea.vmem %s2, %s252
      %p254 = scmp.lt.s32.totalorder %s20, 0
      %s255 = scalar_select %p254, %s20, 0
      %s256 = scalar_lea.vmem %s3, %s255
      %s257 = smul.u32 64, %s19
      %p258 = scmp.lt.s32.totalorder %s257, 511
      %s259 = scalar_select %p258, %s257, 511
      %p260 = scmp.lt.s32.totalorder %s20, 0
      %s261 = scalar_select %p260, %s20, 0
      %s262 = sadd.s32 %s261, %s259
      %s263 = smul.addr %s262, 4
      %s264 = scalar_lea.vmem %s4, %s263
      %s265 = smul.u32 64, %s19
      %v267 = vld [vmem:[%s245] sm:$0xf]
      %v268 = vld [vmem:[%s245 + $0x4] sm:$0xf]
      %v269 = vld [vmem:[%s245 + $0x8] sm:$0xf]
      %v270 = vld [vmem:[%s245 + $0xc] sm:$0xf]
      %v271 = vld [vmem:[%s245 + $0x10] sm:$0xf]
      %v272 = vld [vmem:[%s245 + $0x14] sm:$0xf]
      %v273 = vld [vmem:[%s245 + $0x18] sm:$0xf]
      %v274 = vld [vmem:[%s245 + $0x1c] sm:$0xf]
      %v275 = vld [vmem:[%s245 + $0x20] sm:$0xf]
      %v276 = vld [vmem:[%s245 + $0x24] sm:$0xf]
      %v277 = vld [vmem:[%s245 + $0x28] sm:$0xf]
      %v278 = vld [vmem:[%s245 + $0x2c] sm:$0xf]
      %v279 = vld [vmem:[%s245 + $0x30] sm:$0xf]
      %v280 = vld [vmem:[%s245 + $0x34] sm:$0xf]
      %v281 = vld [vmem:[%s245 + $0x38] sm:$0xf]
      %v282 = vld [vmem:[%s245 + $0x3c] sm:$0xf]
      %v283 = vld [vmem:[%s245 + $0x40] sm:$0xf]
      %v284 = vld [vmem:[%s245 + $0x44] sm:$0xf]
      %v285 = vld [vmem:[%s245 + $0x48] sm:$0xf]
      %v286 = vld [vmem:[%s245 + $0x4c] sm:$0xf]
      %v287 = vld [vmem:[%s245 + $0x50] sm:$0xf]
      %v288 = vld [vmem:[%s245 + $0x54] sm:$0xf]
      %v289 = vld [vmem:[%s245 + $0x58] sm:$0xf]
      %v290 = vld [vmem:[%s245 + $0x5c] sm:$0xf]
      %v291 = vld [vmem:[%s245 + $0x60] sm:$0xf]
      %v292 = vld [vmem:[%s245 + $0x64] sm:$0xf]
      %v293 = vld [vmem:[%s245 + $0x68] sm:$0xf]
      %v294 = vld [vmem:[%s245 + $0x6c] sm:$0xf]
      %v295 = vld [vmem:[%s245 + $0x70] sm:$0xf]
      %v296 = vld [vmem:[%s245 + $0x74] sm:$0xf]
      %v297 = vld [vmem:[%s245 + $0x78] sm:$0xf]
      %v298 = vld [vmem:[%s245 + $0x7c] sm:$0xf]
      %v299 = vld [vmem:[%s245 + $0x80] sm:$0xf]
      %v300 = vld [vmem:[%s245 + $0x84] sm:$0xf]
      %v301 = vld [vmem:[%s245 + $0x88] sm:$0xf]
      %v302 = vld [vmem:[%s245 + $0x8c] sm:$0xf]
      %v303 = vld [vmem:[%s245 + $0x90] sm:$0xf]
      %v304 = vld [vmem:[%s245 + $0x94] sm:$0xf]
      %v305 = vld [vmem:[%s245 + $0x98] sm:$0xf]
      %v306 = vld [vmem:[%s245 + $0x9c] sm:$0xf]
      %v307 = vld [vmem:[%s245 + $0xa0] sm:$0xf]
      %v308 = vld [vmem:[%s245 + $0xa4] sm:$0xf]
      %v309 = vld [vmem:[%s245 + $0xa8] sm:$0xf]
      %v310 = vld [vmem:[%s245 + $0xac] sm:$0xf]
      %v311 = vld [vmem:[%s245 + $0xb0] sm:$0xf]
      %v312 = vld [vmem:[%s245 + $0xb4] sm:$0xf]
      %v313 = vld [vmem:[%s245 + $0xb8] sm:$0xf]
      %v314 = vld [vmem:[%s245 + $0xbc] sm:$0xf]
      %v315 = vld [vmem:[%s245 + $0xc0] sm:$0xf]
      %v316 = vld [vmem:[%s245 + $0xc4] sm:$0xf]
      %v317 = vld [vmem:[%s245 + $0xc8] sm:$0xf]
      %v318 = vld [vmem:[%s245 + $0xcc] sm:$0xf]
      %v319 = vld [vmem:[%s245 + $0xd0] sm:$0xf]
      %v320 = vld [vmem:[%s245 + $0xd4] sm:$0xf]
      %v321 = vld [vmem:[%s245 + $0xd8] sm:$0xf]
      %v322 = vld [vmem:[%s245 + $0xdc] sm:$0xf]
      %v323 = vld [vmem:[%s245 + $0xe0] sm:$0xf]
      %v324 = vld [vmem:[%s245 + $0xe4] sm:$0xf]
      %v325 = vld [vmem:[%s245 + $0xe8] sm:$0xf]
      %v326 = vld [vmem:[%s245 + $0xec] sm:$0xf]
      %v327 = vld [vmem:[%s245 + $0xf0] sm:$0xf]
      %v328 = vld [vmem:[%s245 + $0xf4] sm:$0xf]
      %v329 = vld [vmem:[%s245 + $0xf8] sm:$0xf]
      %v330 = vld [vmem:[%s245 + $0xfc] sm:$0xf]
      %v331 = vld [vmem:[%s250] sm:$0xf]
      %v332 = vld [vmem:[%s250 + $0x4] sm:$0xf]
      %v333 = vld [vmem:[%s250 + $0x8] sm:$0xf]
      %v334 = vld [vmem:[%s250 + $0xc] sm:$0xf]
      %v335 = vld [vmem:[%s250 + $0x10] sm:$0xf]
      %v336 = vld [vmem:[%s250 + $0x14] sm:$0xf]
      %v337 = vld [vmem:[%s250 + $0x18] sm:$0xf]
      %v338 = vld [vmem:[%s250 + $0x1c] sm:$0xf]
      %v339 = vld [vmem:[%s250 + $0x20] sm:$0xf]
      %v340 = vld [vmem:[%s250 + $0x24] sm:$0xf]
      %v341 = vld [vmem:[%s250 + $0x28] sm:$0xf]
      %v342 = vld [vmem:[%s250 + $0x2c] sm:$0xf]
      %v343 = vld [vmem:[%s250 + $0x30] sm:$0xf]
      %v344 = vld [vmem:[%s250 + $0x34] sm:$0xf]
      %v345 = vld [vmem:[%s250 + $0x38] sm:$0xf]
      %v346 = vld [vmem:[%s250 + $0x3c] sm:$0xf]
      %v411 = vunpack.c.l.b16 %v267
      %v412 = vunpack.c.l.b16 %v268
      %v413 = vunpack.c.l.b16 %v269
      %v414 = vunpack.c.l.b16 %v270
      %v415 = vunpack.c.l.b16 %v271
      %v416 = vunpack.c.l.b16 %v272
      %v417 = vunpack.c.l.b16 %v273
      %v418 = vunpack.c.l.b16 %v274
      %v419 = vunpack.c.l.b16 %v275
      %v420 = vunpack.c.l.b16 %v276
      %v421 = vunpack.c.l.b16 %v277
      %v422 = vunpack.c.l.b16 %v278
      %v423 = vunpack.c.l.b16 %v279
      %v424 = vunpack.c.l.b16 %v280
      %v425 = vunpack.c.l.b16 %v281
      %v426 = vunpack.c.l.b16 %v282
      %v427 = vunpack.c.l.b16 %v283
      %v428 = vunpack.c.l.b16 %v284
      %v429 = vunpack.c.l.b16 %v285
      %v430 = vunpack.c.l.b16 %v286
      %v431 = vunpack.c.l.b16 %v287
      %v432 = vunpack.c.l.b16 %v288
      %v433 = vunpack.c.l.b16 %v289
      %v434 = vunpack.c.l.b16 %v290
      %v435 = vunpack.c.l.b16 %v291
      %v436 = vunpack.c.l.b16 %v292
      %v437 = vunpack.c.l.b16 %v293
      %v438 = vunpack.c.l.b16 %v294
      %v439 = vunpack.c.l.b16 %v295
      %v440 = vunpack.c.l.b16 %v296
      %v441 = vunpack.c.l.b16 %v297
      %v442 = vunpack.c.l.b16 %v298
      %v443 = vunpack.c.l.b16 %v299
      %v444 = vunpack.c.l.b16 %v300
      %v445 = vunpack.c.l.b16 %v301
      %v446 = vunpack.c.l.b16 %v302
      %v447 = vunpack.c.l.b16 %v303
      %v448 = vunpack.c.l.b16 %v304
      %v449 = vunpack.c.l.b16 %v305
      %v450 = vunpack.c.l.b16 %v306
      %v451 = vunpack.c.l.b16 %v307
      %v452 = vunpack.c.l.b16 %v308
      %v453 = vunpack.c.l.b16 %v309
      %v454 = vunpack.c.l.b16 %v310
      %v455 = vunpack.c.l.b16 %v311
      %v456 = vunpack.c.l.b16 %v312
      %v457 = vunpack.c.l.b16 %v313
      %v458 = vunpack.c.l.b16 %v314
      %v459 = vunpack.c.l.b16 %v315
      %v460 = vunpack.c.l.b16 %v316
      %v461 = vunpack.c.l.b16 %v317
      %v462 = vunpack.c.l.b16 %v318
      %v463 = vunpack.c.l.b16 %v319
      %v464 = vunpack.c.l.b16 %v320
      %v465 = vunpack.c.l.b16 %v321
      %v466 = vunpack.c.l.b16 %v322
      %v467 = vunpack.c.l.b16 %v323
      %v468 = vunpack.c.l.b16 %v324
      %v469 = vunpack.c.l.b16 %v325
      %v470 = vunpack.c.l.b16 %v326
      %v471 = vunpack.c.l.b16 %v327
      %v472 = vunpack.c.l.b16 %v328
      %v473 = vunpack.c.l.b16 %v329
      %v474 = vunpack.c.l.b16 %v330
      %v475 = vpack.c.b16 %v412, %v411
      %v476 = vpack.c.b16 %v414, %v413
      %v477 = vpack.c.b16 %v416, %v415
      %v478 = vpack.c.b16 %v418, %v417
      %v479 = vpack.c.b16 %v420, %v419
      %v480 = vpack.c.b16 %v422, %v421
      %v481 = vpack.c.b16 %v424, %v423
      %v482 = vpack.c.b16 %v426, %v425
      %v483 = vpack.c.b16 %v428, %v427
      %v484 = vpack.c.b16 %v430, %v429
      %v485 = vpack.c.b16 %v432, %v431
      %v486 = vpack.c.b16 %v434, %v433
      %v487 = vpack.c.b16 %v436, %v435
      %v488 = vpack.c.b16 %v438, %v437
      %v489 = vpack.c.b16 %v440, %v439
      %v490 = vpack.c.b16 %v442, %v441
      %v491 = vpack.c.b16 %v444, %v443
      %v492 = vpack.c.b16 %v446, %v445
      %v493 = vpack.c.b16 %v448, %v447
      %v494 = vpack.c.b16 %v450, %v449
      %v495 = vpack.c.b16 %v452, %v451
      %v496 = vpack.c.b16 %v454, %v453
      %v497 = vpack.c.b16 %v456, %v455
      %v498 = vpack.c.b16 %v458, %v457
      %v499 = vpack.c.b16 %v460, %v459
      %v500 = vpack.c.b16 %v462, %v461
      %v501 = vpack.c.b16 %v464, %v463
      %v502 = vpack.c.b16 %v466, %v465
      %v503 = vpack.c.b16 %v468, %v467
      %v504 = vpack.c.b16 %v470, %v469
      %v505 = vpack.c.b16 %v472, %v471
      %v506 = vpack.c.b16 %v474, %v473
      %v555 = vunpack.c.l.b16 %v331
      %v556 = vunpack.c.l.b16 %v332
      %v557 = vunpack.c.l.b16 %v333
      %v558 = vunpack.c.l.b16 %v334
      %v559 = vunpack.c.l.b16 %v335
      %v560 = vunpack.c.l.b16 %v336
      %v561 = vunpack.c.l.b16 %v337
      %v562 = vunpack.c.l.b16 %v338
      %v563 = vunpack.c.l.b16 %v339
      %v564 = vunpack.c.l.b16 %v340
      %v565 = vunpack.c.l.b16 %v341
      %v566 = vunpack.c.l.b16 %v342
      %v567 = vunpack.c.l.b16 %v343
      %v568 = vunpack.c.l.b16 %v344
      %v569 = vunpack.c.l.b16 %v345
      %v570 = vunpack.c.l.b16 %v346
      %v571 = vpack.c.b16 %v556, %v555
      %v572 = vpack.c.b16 %v558, %v557
      %v573 = vpack.c.b16 %v560, %v559
      %v574 = vpack.c.b16 %v562, %v561
      %v575 = vpack.c.b16 %v564, %v563
      %v576 = vpack.c.b16 %v566, %v565
      %v577 = vpack.c.b16 %v568, %v567
      %v578 = vpack.c.b16 %v570, %v569
      %587 = vmatprep.subr.bf16.mxu0 0
      %588 = vmatpush1.bf16.msra.mxu0 %v571
      %589 = vmatprep.subr.bf16.mxu0 0
      %590 = vmatpush1.bf16.msra.mxu0 %v572
      %591 = vmatprep.subr.bf16.mxu0 0
      %592 = vmatpush1.bf16.msra.mxu0 %v573
      %593 = vmatprep.subr.bf16.mxu0 0
      %594 = vmatpush1.bf16.msra.mxu0 %v574
      %595 = vmatprep.subr.bf16.mxu0 0
      %596 = vmatpush1.bf16.msra.mxu0 %v575
      %597 = vmatprep.subr.bf16.mxu0 0
      %598 = vmatpush1.bf16.msra.mxu0 %v576
      %599 = vmatprep.subr.bf16.mxu0 0
      %600 = vmatpush1.bf16.msra.mxu0 %v577
      %601 = vmatprep.subr.bf16.mxu0 0
      %602 = vmatpush1.bf16.msra.mxu0 %v578
      %603 = vmatprep.subr.bf16.mxu0 0
      %604 = vmatpush1.bf16.msra.mxu0 0
      %605 = vmatprep.subr.bf16.mxu0 0
      %606 = vmatpush1.bf16.msra.mxu0 0
      %607 = vmatprep.subr.bf16.mxu0 0
      %608 = vmatpush1.bf16.msra.mxu0 0
      %609 = vmatprep.subr.bf16.mxu0 0
      %610 = vmatpush1.bf16.msra.mxu0 0
      %611 = vmatprep.subr.bf16.mxu0 0
      %612 = vmatpush1.bf16.msra.mxu0 0
      %613 = vmatprep.subr.bf16.mxu0 0
      %614 = vmatpush1.bf16.msra.mxu0 0
      %615 = vmatprep.subr.bf16.mxu0 0
      %616 = vmatpush1.bf16.msra.mxu0 0
      %617 = vmatprep.subr.bf16.mxu0 0
      %618 = vmatpush1.bf16.msra.mxu0 0
      %619 = vmatprep.mubr.bf16.mxu0 0
      %620 = vmatmul.mubr.bf16.gmra.mrb[0].mxu0 %v475
      %v621 = vpop.f32.mrb[0].mxu0
      %v622 = vadd.f32 0.0, %v621
      %v623 = vpop.f32.mrb[0].mxu0
      %v624 = vpop.f32.mrb[0].mxu0
      %v625 = vadd.f32 0.0, %v624
      %v626 = vpop.f32.mrb[0].mxu0
      %627 = vmatprep.mubr.bf16.mxu0 0
      %628 = vmatmul.mubr.bf16.gmra.mrb[0].mxu0 %v476
      %v629 = vpop.f32.mrb[0].mxu0
      %v630 = vadd.f32 0.0, %v629
      %v631 = vpop.f32.mrb[0].mxu0
      %v632 = vpop.f32.mrb[0].mxu0
      %v633 = vadd.f32 0.0, %v632
      %v634 = vpop.f32.mrb[0].mxu0
      %635 = vmatprep.mubr.bf16.mxu0 0
      %636 = vmatmul.mubr.bf16.gmra.mrb[0].mxu0 %v477
      %v637 = vpop.f32.mrb[0].mxu0
      %v638 = vadd.f32 0.0, %v637
      %v639 = vpop.f32.mrb[0].mxu0
      %v640 = vpop.f32.mrb[0].mxu0
      %v641 = vadd.f32 0.0, %v640
      %v642 = vpop.f32.mrb[0].mxu0
      %643 = vmatprep.mubr.bf16.mxu0 0
      %644 = vmatmul.mubr.bf16.gmra.mrb[0].mxu0 %v478
      %v645 = vpop.f32.mrb[0].mxu0
      %v646 = vadd.f32 0.0, %v645
      %v647 = vpop.f32.mrb[0].mxu0
      %v648 = vpop.f32.mrb[0].mxu0
      %v649 = vadd.f32 0.0, %v648
      %v650 = vpop.f32.mrb[0].mxu0
      %651 = vmatprep.mubr.bf16.mxu0 0
      %652 = vmatmul.mubr.bf16.gmra.mrb[0].mxu0 %v479
      %v653 = vpop.f32.mrb[0].mxu0
      %v654 = vadd.f32 0.0, %v653
      %v655 = vpop.f32.mrb[0].mxu0
      %v656 = vpop.f32.mrb[0].mxu0
      %v657 = vadd.f32 0.0, %v656
      %v658 = vpop.f32.mrb[0].mxu0
      %659 = vmatprep.mubr.bf16.mxu0 0
      %660 = vmatmul.mubr.bf16.gmra.mrb[0].mxu0 %v480
      %v661 = vpop.f32.mrb[0].mxu0
      %v662 = vadd.f32 0.0, %v661
      %v663 = vpop.f32.mrb[0].mxu0
      %v664 = vpop.f32.mrb[0].mxu0
      %v665 = vadd.f32 0.0, %v664
      %v666 = vpop.f32.mrb[0].mxu0
      %667 = vmatprep.mubr.bf16.mxu0 0
      %668 = vmatmul.mubr.bf16.gmra.mrb[0].mxu0 %v481
      %v669 = vpop.f32.mrb[0].mxu0
      %v670 = vadd.f32 0.0, %v669
      %v671 = vpop.f32.mrb[0].mxu0
      %v672 = vpop.f32.mrb[0].mxu0
      %v673 = vadd.f32 0.0, %v672
      %v674 = vpop.f32.mrb[0].mxu0
      %675 = vmatprep.mubr.bf16.mxu0 0
      %676 = vmatmul.mubr.bf16.gmra.mrb[0].mxu0 %v482
      %v677 = vpop.f32.mrb[0].mxu0
      %v678 = vadd.f32 0.0, %v677
      %v679 = vpop.f32.mrb[0].mxu0
      %v680 = vpop.f32.mrb[0].mxu0
      %v681 = vadd.f32 0.0, %v680
      %v682 = vpop.f32.mrb[0].mxu0
      %683 = vmatprep.mubr.bf16.mxu0 0
      %684 = vmatmul.mubr.bf16.gmra.mrb[0].mxu0 %v483
      %v685 = vpop.f32.mrb[0].mxu0
      %v686 = vadd.f32 0.0, %v685
      %v687 = vpop.f32.mrb[0].mxu0
      %v688 = vpop.f32.mrb[0].mxu0
      %v689 = vadd.f32 0.0, %v688
      %v690 = vpop.f32.mrb[0].mxu0
      %691 = vmatprep.mubr.bf16.mxu0 0
      %692 = vmatmul.mubr.bf16.gmra.mrb[0].mxu0 %v484
      %v693 = vpop.f32.mrb[0].mxu0
      %v694 = vadd.f32 0.0, %v693
      %v695 = vpop.f32.mrb[0].mxu0
      %v696 = vpop.f32.mrb[0].mxu0
      %v697 = vadd.f32 0.0, %v696
      %v698 = vpop.f32.mrb[0].mxu0
      %699 = vmatprep.mubr.bf16.mxu0 0
      %700 = vmatmul.mubr.bf16.gmra.mrb[0].mxu0 %v485
      %v701 = vpop.f32.mrb[0].mxu0
      %v702 = vadd.f32 0.0, %v701
      %v703 = vpop.f32.mrb[0].mxu0
      %v704 = vpop.f32.mrb[0].mxu0
      %v705 = vadd.f32 0.0, %v704
      %v706 = vpop.f32.mrb[0].mxu0
      %707 = vmatprep.mubr.bf16.mxu0 0
      %708 = vmatmul.mubr.bf16.gmra.mrb[0].mxu0 %v486
      %v709 = vpop.f32.mrb[0].mxu0
      %v710 = vadd.f32 0.0, %v709
      %v711 = vpop.f32.mrb[0].mxu0
      %v712 = vpop.f32.mrb[0].mxu0
      %v713 = vadd.f32 0.0, %v712
      %v714 = vpop.f32.mrb[0].mxu0
      %715 = vmatprep.mubr.bf16.mxu0 0
      %716 = vmatmul.mubr.bf16.gmra.mrb[0].mxu0 %v487
      %v717 = vpop.f32.mrb[0].mxu0
      %v718 = vadd.f32 0.0, %v717
      %v719 = vpop.f32.mrb[0].mxu0
      %v720 = vpop.f32.mrb[0].mxu0
      %v721 = vadd.f32 0.0, %v720
      %v722 = vpop.f32.mrb[0].mxu0
      %723 = vmatprep.mubr.bf16.mxu0 0
      %724 = vmatmul.mubr.bf16.gmra.mrb[0].mxu0 %v488
      %v725 = vpop.f32.mrb[0].mxu0
      %v726 = vadd.f32 0.0, %v725
      %v727 = vpop.f32.mrb[0].mxu0
      %v728 = vpop.f32.mrb[0].mxu0
      %v729 = vadd.f32 0.0, %v728
      %v730 = vpop.f32.mrb[0].mxu0
      %731 = vmatprep.mubr.bf16.mxu0 0
      %732 = vmatmul.mubr.bf16.gmra.mrb[0].mxu0 %v489
      %v733 = vpop.f32.mrb[0].mxu0
      %v734 = vadd.f32 0.0, %v733
      %v735 = vpop.f32.mrb[0].mxu0
      %v736 = vpop.f32.mrb[0].mxu0
      %v737 = vadd.f32 0.0, %v736
      %v738 = vpop.f32.mrb[0].mxu0
      %739 = vmatprep.mubr.bf16.mxu0 0
      %740 = vmatmul.mubr.bf16.gmra.mrb[0].mxu0 %v490
      %v741 = vpop.f32.mrb[0].mxu0
      %v742 = vadd.f32 0.0, %v741
      %v743 = vpop.f32.mrb[0].mxu0
      %v744 = vpop.f32.mrb[0].mxu0
      %v745 = vadd.f32 0.0, %v744
      %v746 = vpop.f32.mrb[0].mxu0
      %747 = vmatprep.mubr.bf16.mxu0 0
      %748 = vmatmul.mubr.bf16.gmra.mrb[0].mxu0 %v491
      %v749 = vpop.f32.mrb[0].mxu0
      %v750 = vadd.f32 0.0, %v749
      %v751 = vpop.f32.mrb[0].mxu0
      %v752 = vpop.f32.mrb[0].mxu0
      %v753 = vadd.f32 0.0, %v752
      %v754 = vpop.f32.mrb[0].mxu0
      %755 = vmatprep.mubr.bf16.mxu0 0
      %756 = vmatmul.mubr.bf16.gmra.mrb[0].mxu0 %v492
      %v757 = vpop.f32.mrb[0].mxu0
      %v758 = vadd.f32 0.0, %v757
      %v759 = vpop.f32.mrb[0].mxu0
      %v760 = vpop.f32.mrb[0].mxu0
      %v761 = vadd.f32 0.0, %v760
      %v762 = vpop.f32.mrb[0].mxu0
      %763 = vmatprep.mubr.bf16.mxu0 0
      %764 = vmatmul.mubr.bf16.gmra.mrb[0].mxu0 %v493
      %v765 = vpop.f32.mrb[0].mxu0
      %v766 = vadd.f32 0.0, %v765
      %v767 = vpop.f32.mrb[0].mxu0
      %v768 = vpop.f32.mrb[0].mxu0
      %v769 = vadd.f32 0.0, %v768
      %v770 = vpop.f32.mrb[0].mxu0
      %771 = vmatprep.mubr.bf16.mxu0 0
      %772 = vmatmul.mubr.bf16.gmra.mrb[0].mxu0 %v494
      %v773 = vpop.f32.mrb[0].mxu0
      %v774 = vadd.f32 0.0, %v773
      %v775 = vpop.f32.mrb[0].mxu0
      %v776 = vpop.f32.mrb[0].mxu0
      %v777 = vadd.f32 0.0, %v776
      %v778 = vpop.f32.mrb[0].mxu0
      %779 = vmatprep.mubr.bf16.mxu0 0
      %780 = vmatmul.mubr.bf16.gmra.mrb[0].mxu0 %v495
      %v781 = vpop.f32.mrb[0].mxu0
      %v782 = vadd.f32 0.0, %v781
      %v783 = vpop.f32.mrb[0].mxu0
      %v784 = vpop.f32.mrb[0].mxu0
      %v785 = vadd.f32 0.0, %v784
      %v786 = vpop.f32.mrb[0].mxu0
      %787 = vmatprep.mubr.bf16.mxu0 0
      %788 = vmatmul.mubr.bf16.gmra.mrb[0].mxu0 %v496
      %v789 = vpop.f32.mrb[0].mxu0
      %v790 = vadd.f32 0.0, %v789
      %v791 = vpop.f32.mrb[0].mxu0
      %v792 = vpop.f32.mrb[0].mxu0
      %v793 = vadd.f32 0.0, %v792
      %v794 = vpop.f32.mrb[0].mxu0
      %795 = vmatprep.mubr.bf16.mxu0 0
      %796 = vmatmul.mubr.bf16.gmra.mrb[0].mxu0 %v497
      %v797 = vpop.f32.mrb[0].mxu0
      %v798 = vadd.f32 0.0, %v797
      %v799 = vpop.f32.mrb[0].mxu0
      %v800 = vpop.f32.mrb[0].mxu0
      %v801 = vadd.f32 0.0, %v800
      %v802 = vpop.f32.mrb[0].mxu0
      %803 = vmatprep.mubr.bf16.mxu0 0
      %804 = vmatmul.mubr.bf16.gmra.mrb[0].mxu0 %v498
      %v805 = vpop.f32.mrb[0].mxu0
      %v806 = vadd.f32 0.0, %v805
      %v807 = vpop.f32.mrb[0].mxu0
      %v808 = vpop.f32.mrb[0].mxu0
      %v809 = vadd.f32 0.0, %v808
      %v810 = vpop.f32.mrb[0].mxu0
      %811 = vmatprep.mubr.bf16.mxu0 0
      %812 = vmatmul.mubr.bf16.gmra.mrb[0].mxu0 %v499
      %v813 = vpop.f32.mrb[0].mxu0
      %v814 = vadd.f32 0.0, %v813
      %v815 = vpop.f32.mrb[0].mxu0
      %v816 = vpop.f32.mrb[0].mxu0
      %v817 = vadd.f32 0.0, %v816
      %v818 = vpop.f32.mrb[0].mxu0
      %819 = vmatprep.mubr.bf16.mxu0 0
      %820 = vmatmul.mubr.bf16.gmra.mrb[0].mxu0 %v500
      %v821 = vpop.f32.mrb[0].mxu0
      %v822 = vadd.f32 0.0, %v821
      %v823 = vpop.f32.mrb[0].mxu0
      %v824 = vpop.f32.mrb[0].mxu0
      %v825 = vadd.f32 0.0, %v824
      %v826 = vpop.f32.mrb[0].mxu0
      %827 = vmatprep.mubr.bf16.mxu0 0
      %828 = vmatmul.mubr.bf16.gmra.mrb[0].mxu0 %v501
      %v829 = vpop.f32.mrb[0].mxu0
      %v830 = vadd.f32 0.0, %v829
      %v831 = vpop.f32.mrb[0].mxu0
      %v832 = vpop.f32.mrb[0].mxu0
      %v833 = vadd.f32 0.0, %v832
      %v834 = vpop.f32.mrb[0].mxu0
      %835 = vmatprep.mubr.bf16.mxu0 0
      %836 = vmatmul.mubr.bf16.gmra.mrb[0].mxu0 %v502
      %v837 = vpop.f32.mrb[0].mxu0
      %v838 = vadd.f32 0.0, %v837
      %v839 = vpop.f32.mrb[0].mxu0
      %v840 = vpop.f32.mrb[0].mxu0
      %v841 = vadd.f32 0.0, %v840
      %v842 = vpop.f32.mrb[0].mxu0
      %843 = vmatprep.mubr.bf16.mxu0 0
      %844 = vmatmul.mubr.bf16.gmra.mrb[0].mxu0 %v503
      %v845 = vpop.f32.mrb[0].mxu0
      %v846 = vadd.f32 0.0, %v845
      %v847 = vpop.f32.mrb[0].mxu0
      %v848 = vpop.f32.mrb[0].mxu0
      %v849 = vadd.f32 0.0, %v848
      %v850 = vpop.f32.mrb[0].mxu0
      %851 = vmatprep.mubr.bf16.mxu0 0
      %852 = vmatmul.mubr.bf16.gmra.mrb[0].mxu0 %v504
      %v853 = vpop.f32.mrb[0].mxu0
      %v854 = vadd.f32 0.0, %v853
      %v855 = vpop.f32.mrb[0].mxu0
      %v856 = vpop.f32.mrb[0].mxu0
      %v857 = vadd.f32 0.0, %v856
      %v858 = vpop.f32.mrb[0].mxu0
      %859 = vmatprep.mubr.bf16.mxu0 0
      %860 = vmatmul.mubr.bf16.gmra.mrb[0].mxu0 %v505
      %v861 = vpop.f32.mrb[0].mxu0
      %v862 = vadd.f32 0.0, %v861
      %v863 = vpop.f32.mrb[0].mxu0
      %v864 = vpop.f32.mrb[0].mxu0
      %v865 = vadd.f32 0.0, %v864
      %v866 = vpop.f32.mrb[0].mxu0
      %867 = vmatprep.mubr.bf16.mxu0 0
      %868 = vmatmul.mubr.bf16.gmra.mrb[0].mxu0 %v506
      %v869 = vpop.f32.mrb[0].mxu0
      %v870 = vadd.f32 0.0, %v869
      %v871 = vpop.f32.mrb[0].mxu0
      %v872 = vpop.f32.mrb[0].mxu0
      %v873 = vadd.f32 0.0, %v872
      %v874 = vpop.f32.mrb[0].mxu0
      %875 = vdwg.mxu0
      %v876 = vld [vmem:[%s253] sm:$0x1]
      %v878 = vlaneseq
      %v879 = vshrl.u32 %v878, 7
      %v880 = vsub.s32 0, %v879
      %v881 = vrot.slane %v876, %v880
      %v883 = vmul.f32 %v622, %v881
      %v884 = vmul.f32 %v625, %v881
      %v885 = vmul.f32 %v630, %v881
      %v886 = vmul.f32 %v633, %v881
      %v887 = vmul.f32 %v638, %v881
      %v888 = vmul.f32 %v641, %v881
      %v889 = vmul.f32 %v646, %v881
      %v890 = vmul.f32 %v649, %v881
      %v891 = vmul.f32 %v654, %v881
      %v892 = vmul.f32 %v657, %v881
      %v893 = vmul.f32 %v662, %v881
      %v894 = vmul.f32 %v665, %v881
      %v895 = vmul.f32 %v670, %v881
      %v896 = vmul.f32 %v673, %v881
      %v897 = vmul.f32 %v678, %v881
      %v898 = vmul.f32 %v681, %v881
      %v899 = vmul.f32 %v686, %v881
      %v900 = vmul.f32 %v689, %v881
      %v901 = vmul.f32 %v694, %v881
      %v902 = vmul.f32 %v697, %v881
      %v903 = vmul.f32 %v702, %v881
      %v904 = vmul.f32 %v705, %v881
      %v905 = vmul.f32 %v710, %v881
      %v906 = vmul.f32 %v713, %v881
      %v907 = vmul.f32 %v718, %v881
      %v908 = vmul.f32 %v721, %v881
      %v909 = vmul.f32 %v726, %v881
      %v910 = vmul.f32 %v729, %v881
      %v911 = vmul.f32 %v734, %v881
      %v912 = vmul.f32 %v737, %v881
      %v913 = vmul.f32 %v742, %v881
      %v914 = vmul.f32 %v745, %v881
      %v915 = vmul.f32 %v750, %v881
      %v916 = vmul.f32 %v753, %v881
      %v917 = vmul.f32 %v758, %v881
      %v918 = vmul.f32 %v761, %v881
      %v919 = vmul.f32 %v766, %v881
      %v920 = vmul.f32 %v769, %v881
      %v921 = vmul.f32 %v774, %v881
      %v922 = vmul.f32 %v777, %v881
      %v923 = vmul.f32 %v782, %v881
      %v924 = vmul.f32 %v785, %v881
      %v925 = vmul.f32 %v790, %v881
      %v926 = vmul.f32 %v793, %v881
      %v927 = vmul.f32 %v798, %v881
      %v928 = vmul.f32 %v801, %v881
      %v929 = vmul.f32 %v806, %v881
      %v930 = vmul.f32 %v809, %v881
      %v931 = vmul.f32 %v814, %v881
      %v932 = vmul.f32 %v817, %v881
      %v933 = vmul.f32 %v822, %v881
      %v934 = vmul.f32 %v825, %v881
      %v935 = vmul.f32 %v830, %v881
      %v936 = vmul.f32 %v833, %v881
      %v937 = vmul.f32 %v838, %v881
      %v938 = vmul.f32 %v841, %v881
      %v939 = vmul.f32 %v846, %v881
      %v940 = vmul.f32 %v849, %v881
      %v941 = vmul.f32 %v854, %v881
      %v942 = vmul.f32 %v857, %v881
      %v943 = vmul.f32 %v862, %v881
      %v944 = vmul.f32 %v865, %v881
      %v945 = vmul.f32 %v870, %v881
      %v946 = vmul.f32 %v873, %v881
      %v947 = vld [vmem:[%s256] sm:$0x1]
      %v949 = vlaneseq
      %v950 = vshrl.u32 %v949, 7
      %v951 = vsub.s32 0, %v950
      %v952 = vrot.slane %v947, %v951
      %v954 = vadd.f32 %v883, %v952
      %v955 = vadd.f32 %v884, %v952
      %v956 = vadd.f32 %v885, %v952
      %v957 = vadd.f32 %v886, %v952
      %v958 = vadd.f32 %v887, %v952
      %v959 = vadd.f32 %v888, %v952
      %v960 = vadd.f32 %v889, %v952
      %v961 = vadd.f32 %v890, %v952
      %v962 = vadd.f32 %v891, %v952
      %v963 = vadd.f32 %v892, %v952
      %v964 = vadd.f32 %v893, %v952
      %v965 = vadd.f32 %v894, %v952
      %v966 = vadd.f32 %v895, %v952
      %v967 = vadd.f32 %v896, %v952
      %v968 = vadd.f32 %v897, %v952
      %v969 = vadd.f32 %v898, %v952
      %v970 = vadd.f32 %v899, %v952
      %v971 = vadd.f32 %v900, %v952
      %v972 = vadd.f32 %v901, %v952
      %v973 = vadd.f32 %v902, %v952
      %v974 = vadd.f32 %v903, %v952
      %v975 = vadd.f32 %v904, %v952
      %v976 = vadd.f32 %v905, %v952
      %v977 = vadd.f32 %v906, %v952
      %v978 = vadd.f32 %v907, %v952
      %v979 = vadd.f32 %v908, %v952
      %v980 = vadd.f32 %v909, %v952
      %v981 = vadd.f32 %v910, %v952
      %v982 = vadd.f32 %v911, %v952
      %v983 = vadd.f32 %v912, %v952
      %v984 = vadd.f32 %v913, %v952
      %v985 = vadd.f32 %v914, %v952
      %v986 = vadd.f32 %v915, %v952
      %v987 = vadd.f32 %v916, %v952
      %v988 = vadd.f32 %v917, %v952
      %v989 = vadd.f32 %v918, %v952
      %v990 = vadd.f32 %v919, %v952
      %v991 = vadd.f32 %v920, %v952
      %v992 = vadd.f32 %v921, %v952
      %v993 = vadd.f32 %v922, %v952
      %v994 = vadd.f32 %v923, %v952
      %v995 = vadd.f32 %v924, %v952
      %v996 = vadd.f32 %v925, %v952
      %v997 = vadd.f32 %v926, %v952
      %v998 = vadd.f32 %v927, %v952
      %v999 = vadd.f32 %v928, %v952
      %v1000 = vadd.f32 %v929, %v952
      %v1001 = vadd.f32 %v930, %v952
      %v1002 = vadd.f32 %v931, %v952
      %v1003 = vadd.f32 %v932, %v952
      %v1004 = vadd.f32 %v933, %v952
      %v1005 = vadd.f32 %v934, %v952
      %v1006 = vadd.f32 %v935, %v952
      %v1007 = vadd.f32 %v936, %v952
      %v1008 = vadd.f32 %v937, %v952
      %v1009 = vadd.f32 %v938, %v952
      %v1010 = vadd.f32 %v939, %v952
      %v1011 = vadd.f32 %v940, %v952
      %v1012 = vadd.f32 %v941, %v952
      %v1013 = vadd.f32 %v942, %v952
      %v1014 = vadd.f32 %v943, %v952
      %v1015 = vadd.f32 %v944, %v952
      %v1016 = vadd.f32 %v945, %v952
      %v1017 = vadd.f32 %v946, %v952
      %v1018 = vpack.c.bf16 %v955, %v954
      %v1019 = vpack.c.bf16 %v957, %v956
      %v1020 = vpack.c.bf16 %v959, %v958
      %v1021 = vpack.c.bf16 %v961, %v960
      %v1022 = vpack.c.bf16 %v963, %v962
      %v1023 = vpack.c.bf16 %v965, %v964
      %v1024 = vpack.c.bf16 %v967, %v966
      %v1025 = vpack.c.bf16 %v969, %v968
      %v1026 = vpack.c.bf16 %v971, %v970
      %v1027 = vpack.c.bf16 %v973, %v972
      %v1028 = vpack.c.bf16 %v975, %v974
      %v1029 = vpack.c.bf16 %v977, %v976
      %v1030 = vpack.c.bf16 %v979, %v978
      %v1031 = vpack.c.bf16 %v981, %v980
      %v1032 = vpack.c.bf16 %v983, %v982
      %v1033 = vpack.c.bf16 %v985, %v984
      %v1034 = vpack.c.bf16 %v987, %v986
      %v1035 = vpack.c.bf16 %v989, %v988
      %v1036 = vpack.c.bf16 %v991, %v990
      %v1037 = vpack.c.bf16 %v993, %v992
      %v1038 = vpack.c.bf16 %v995, %v994
      %v1039 = vpack.c.bf16 %v997, %v996
      %v1040 = vpack.c.bf16 %v999, %v998
      %v1041 = vpack.c.bf16 %v1001, %v1000
      %v1042 = vpack.c.bf16 %v1003, %v1002
      %v1043 = vpack.c.bf16 %v1005, %v1004
      %v1044 = vpack.c.bf16 %v1007, %v1006
      %v1045 = vpack.c.bf16 %v1009, %v1008
      %v1046 = vpack.c.bf16 %v1011, %v1010
      %v1047 = vpack.c.bf16 %v1013, %v1012
      %v1048 = vpack.c.bf16 %v1015, %v1014
      %v1049 = vpack.c.bf16 %v1017, %v1016
      %v1082 = vunpack.c.l.b16 %v1018
      %v1083 = vunpack.c.h.b16 %v1018
      %v1084 = vunpack.c.l.b16 %v1019
      %v1085 = vunpack.c.h.b16 %v1019
      %v1086 = vunpack.c.l.b16 %v1020
      %v1087 = vunpack.c.h.b16 %v1020
      %v1088 = vunpack.c.l.b16 %v1021
      %v1089 = vunpack.c.h.b16 %v1021
      %v1090 = vunpack.c.l.b16 %v1022
      %v1091 = vunpack.c.h.b16 %v1022
      %v1092 = vunpack.c.l.b16 %v1023
      %v1093 = vunpack.c.h.b16 %v1023
      %v1094 = vunpack.c.l.b16 %v1024
      %v1095 = vunpack.c.h.b16 %v1024
      %v1096 = vunpack.c.l.b16 %v1025
      %v1097 = vunpack.c.h.b16 %v1025
      %v1098 = vunpack.c.l.b16 %v1026
      %v1099 = vunpack.c.h.b16 %v1026
      %v1100 = vunpack.c.l.b16 %v1027
      %v1101 = vunpack.c.h.b16 %v1027
      %v1102 = vunpack.c.l.b16 %v1028
      %v1103 = vunpack.c.h.b16 %v1028
      %v1104 = vunpack.c.l.b16 %v1029
      %v1105 = vunpack.c.h.b16 %v1029
      %v1106 = vunpack.c.l.b16 %v1030
      %v1107 = vunpack.c.h.b16 %v1030
      %v1108 = vunpack.c.l.b16 %v1031
      %v1109 = vunpack.c.h.b16 %v1031
      %v1110 = vunpack.c.l.b16 %v1032
      %v1111 = vunpack.c.h.b16 %v1032
      %v1112 = vunpack.c.l.b16 %v1033
      %v1113 = vunpack.c.h.b16 %v1033
      %v1114 = vunpack.c.l.b16 %v1034
      %v1115 = vunpack.c.h.b16 %v1034
      %v1116 = vunpack.c.l.b16 %v1035
      %v1117 = vunpack.c.h.b16 %v1035
      %v1118 = vunpack.c.l.b16 %v1036
      %v1119 = vunpack.c.h.b16 %v1036
      %v1120 = vunpack.c.l.b16 %v1037
      %v1121 = vunpack.c.h.b16 %v1037
      %v1122 = vunpack.c.l.b16 %v1038
      %v1123 = vunpack.c.h.b16 %v1038
      %v1124 = vunpack.c.l.b16 %v1039
      %v1125 = vunpack.c.h.b16 %v1039
      %v1126 = vunpack.c.l.b16 %v1040
      %v1127 = vunpack.c.h.b16 %v1040
      %v1128 = vunpack.c.l.b16 %v1041
      %v1129 = vunpack.c.h.b16 %v1041
      %v1130 = vunpack.c.l.b16 %v1042
      %v1131 = vunpack.c.h.b16 %v1042
      %v1132 = vunpack.c.l.b16 %v1043
      %v1133 = vunpack.c.h.b16 %v1043
      %v1134 = vunpack.c.l.b16 %v1044
      %v1135 = vunpack.c.h.b16 %v1044
      %v1136 = vunpack.c.l.b16 %v1045
      %v1137 = vunpack.c.h.b16 %v1045
      %v1138 = vunpack.c.l.b16 %v1046
      %v1139 = vunpack.c.h.b16 %v1046
      %v1140 = vunpack.c.l.b16 %v1047
      %v1141 = vunpack.c.h.b16 %v1047
      %v1142 = vunpack.c.l.b16 %v1048
      %v1143 = vunpack.c.h.b16 %v1048
      %v1144 = vunpack.c.l.b16 %v1049
      %v1145 = vunpack.c.h.b16 %v1049
      %v1146 = vpack.c.b16 %v1082, %v1082
      %v1147 = vpack.c.b16 %v1083, %v1083
      %v1148 = vpack.c.b16 %v1084, %v1084
      %v1149 = vpack.c.b16 %v1085, %v1085
      %v1150 = vpack.c.b16 %v1086, %v1086
      %v1151 = vpack.c.b16 %v1087, %v1087
      %v1152 = vpack.c.b16 %v1088, %v1088
      %v1153 = vpack.c.b16 %v1089, %v1089
      %v1154 = vpack.c.b16 %v1090, %v1090
      %v1155 = vpack.c.b16 %v1091, %v1091
      %v1156 = vpack.c.b16 %v1092, %v1092
      %v1157 = vpack.c.b16 %v1093, %v1093
      %v1158 = vpack.c.b16 %v1094, %v1094
      %v1159 = vpack.c.b16 %v1095, %v1095
      %v1160 = vpack.c.b16 %v1096, %v1096
      %v1161 = vpack.c.b16 %v1097, %v1097
      %v1162 = vpack.c.b16 %v1098, %v1098
      %v1163 = vpack.c.b16 %v1099, %v1099
      %v1164 = vpack.c.b16 %v1100, %v1100
      %v1165 = vpack.c.b16 %v1101, %v1101
      %v1166 = vpack.c.b16 %v1102, %v1102
      %v1167 = vpack.c.b16 %v1103, %v1103
      %v1168 = vpack.c.b16 %v1104, %v1104
      %v1169 = vpack.c.b16 %v1105, %v1105
      %v1170 = vpack.c.b16 %v1106, %v1106
      %v1171 = vpack.c.b16 %v1107, %v1107
      %v1172 = vpack.c.b16 %v1108, %v1108
      %v1173 = vpack.c.b16 %v1109, %v1109
      %v1174 = vpack.c.b16 %v1110, %v1110
      %v1175 = vpack.c.b16 %v1111, %v1111
      %v1176 = vpack.c.b16 %v1112, %v1112
      %v1177 = vpack.c.b16 %v1113, %v1113
      %v1178 = vpack.c.b16 %v1114, %v1114
      %v1179 = vpack.c.b16 %v1115, %v1115
      %v1180 = vpack.c.b16 %v1116, %v1116
      %v1181 = vpack.c.b16 %v1117, %v1117
      %v1182 = vpack.c.b16 %v1118, %v1118
      %v1183 = vpack.c.b16 %v1119, %v1119
      %v1184 = vpack.c.b16 %v1120, %v1120
      %v1185 = vpack.c.b16 %v1121, %v1121
      %v1186 = vpack.c.b16 %v1122, %v1122
      %v1187 = vpack.c.b16 %v1123, %v1123
      %v1188 = vpack.c.b16 %v1124, %v1124
      %v1189 = vpack.c.b16 %v1125, %v1125
      %v1190 = vpack.c.b16 %v1126, %v1126
      %v1191 = vpack.c.b16 %v1127, %v1127
      %v1192 = vpack.c.b16 %v1128, %v1128
      %v1193 = vpack.c.b16 %v1129, %v1129
      %v1194 = vpack.c.b16 %v1130, %v1130
      %v1195 = vpack.c.b16 %v1131, %v1131
      %v1196 = vpack.c.b16 %v1132, %v1132
      %v1197 = vpack.c.b16 %v1133, %v1133
      %v1198 = vpack.c.b16 %v1134, %v1134
      %v1199 = vpack.c.b16 %v1135, %v1135
      %v1200 = vpack.c.b16 %v1136, %v1136
      %v1201 = vpack.c.b16 %v1137, %v1137
      %v1202 = vpack.c.b16 %v1138, %v1138
      %v1203 = vpack.c.b16 %v1139, %v1139
      %v1204 = vpack.c.b16 %v1140, %v1140
      %v1205 = vpack.c.b16 %v1141, %v1141
      %v1206 = vpack.c.b16 %v1142, %v1142
      %v1207 = vpack.c.b16 %v1143, %v1143
      %v1208 = vpack.c.b16 %v1144, %v1144
      %v1209 = vpack.c.b16 %v1145, %v1145
      %1274 = vst [vmem:[%s264] sm:$0xf] %v1146
      %1275 = vst [vmem:[%s264 + $0x4] sm:$0xf] %v1147
      %1276 = vst [vmem:[%s264 + $0x8] sm:$0xf] %v1148
      %1277 = vst [vmem:[%s264 + $0xc] sm:$0xf] %v1149
      %1278 = vst [vmem:[%s264 + $0x10] sm:$0xf] %v1150
      %1279 = vst [vmem:[%s264 + $0x14] sm:$0xf] %v1151
      %1280 = vst [vmem:[%s264 + $0x18] sm:$0xf] %v1152
      %1281 = vst [vmem:[%s264 + $0x1c] sm:$0xf] %v1153
      %1282 = vst [vmem:[%s264 + $0x20] sm:$0xf] %v1154
      %1283 = vst [vmem:[%s264 + $0x24] sm:$0xf] %v1155
      %1284 = vst [vmem:[%s264 + $0x28] sm:$0xf] %v1156
      %1285 = vst [vmem:[%s264 + $0x2c] sm:$0xf] %v1157
      %1286 = vst [vmem:[%s264 + $0x30] sm:$0xf] %v1158
      %1287 = vst [vmem:[%s264 + $0x34] sm:$0xf] %v1159
      %1288 = vst [vmem:[%s264 + $0x38] sm:$0xf] %v1160
      %1289 = vst [vmem:[%s264 + $0x3c] sm:$0xf] %v1161
      %1290 = vst [vmem:[%s264 + $0x40] sm:$0xf] %v1162
      %1291 = vst [vmem:[%s264 + $0x44] sm:$0xf] %v1163
      %1292 = vst [vmem:[%s264 + $0x48] sm:$0xf] %v1164
      %1293 = vst [vmem:[%s264 + $0x4c] sm:$0xf] %v1165
      %1294 = vst [vmem:[%s264 + $0x50] sm:$0xf] %v1166
      %1295 = vst [vmem:[%s264 + $0x54] sm:$0xf] %v1167
      %1296 = vst [vmem:[%s264 + $0x58] sm:$0xf] %v1168
      %1297 = vst [vmem:[%s264 + $0x5c] sm:$0xf] %v1169
      %1298 = vst [vmem:[%s264 + $0x60] sm:$0xf] %v1170
      %1299 = vst [vmem:[%s264 + $0x64] sm:$0xf] %v1171
      %1300 = vst [vmem:[%s264 + $0x68] sm:$0xf] %v1172
      %1301 = vst [vmem:[%s264 + $0x6c] sm:$0xf] %v1173
      %1302 = vst [vmem:[%s264 + $0x70] sm:$0xf] %v1174
      %1303 = vst [vmem:[%s264 + $0x74] sm:$0xf] %v1175
      %1304 = vst [vmem:[%s264 + $0x78] sm:$0xf] %v1176
      %1305 = vst [vmem:[%s264 + $0x7c] sm:$0xf] %v1177
      %1306 = vst [vmem:[%s264 + $0x80] sm:$0xf] %v1178
      %1307 = vst [vmem:[%s264 + $0x84] sm:$0xf] %v1179
      %1308 = vst [vmem:[%s264 + $0x88] sm:$0xf] %v1180
      %1309 = vst [vmem:[%s264 + $0x8c] sm:$0xf] %v1181
      %1310 = vst [vmem:[%s264 + $0x90] sm:$0xf] %v1182
      %1311 = vst [vmem:[%s264 + $0x94] sm:$0xf] %v1183
      %1312 = vst [vmem:[%s264 + $0x98] sm:$0xf] %v1184
      %1313 = vst [vmem:[%s264 + $0x9c] sm:$0xf] %v1185
      %1314 = vst [vmem:[%s264 + $0xa0] sm:$0xf] %v1186
      %1315 = vst [vmem:[%s264 + $0xa4] sm:$0xf] %v1187
      %1316 = vst [vmem:[%s264 + $0xa8] sm:$0xf] %v1188
      %1317 = vst [vmem:[%s264 + $0xac] sm:$0xf] %v1189
      %1318 = vst [vmem:[%s264 + $0xb0] sm:$0xf] %v1190
      %1319 = vst [vmem:[%s264 + $0xb4] sm:$0xf] %v1191
      %1320 = vst [vmem:[%s264 + $0xb8] sm:$0xf] %v1192
      %1321 = vst [vmem:[%s264 + $0xbc] sm:$0xf] %v1193
      %1322 = vst [vmem:[%s264 + $0xc0] sm:$0xf] %v1194
      %1323 = vst [vmem:[%s264 + $0xc4] sm:$0xf] %v1195
      %1324 = vst [vmem:[%s264 + $0xc8] sm:$0xf] %v1196
      %1325 = vst [vmem:[%s264 + $0xcc] sm:$0xf] %v1197
      %1326 = vst [vmem:[%s264 + $0xd0] sm:$0xf] %v1198
      %1327 = vst [vmem:[%s264 + $0xd4] sm:$0xf] %v1199
      %1328 = vst [vmem:[%s264 + $0xd8] sm:$0xf] %v1200
      %1329 = vst [vmem:[%s264 + $0xdc] sm:$0xf] %v1201
      %1330 = vst [vmem:[%s264 + $0xe0] sm:$0xf] %v1202
      %1331 = vst [vmem:[%s264 + $0xe4] sm:$0xf] %v1203
      %1332 = vst [vmem:[%s264 + $0xe8] sm:$0xf] %v1204
      %1333 = vst [vmem:[%s264 + $0xec] sm:$0xf] %v1205
      %1334 = vst [vmem:[%s264 + $0xf0] sm:$0xf] %v1206
      %1335 = vst [vmem:[%s264 + $0xf4] sm:$0xf] %v1207
      %1336 = vst [vmem:[%s264 + $0xf8] sm:$0xf] %v1208
      %1337 = vst [vmem:[%s264 + $0xfc] sm:$0xf] %v1209
      %s1338 = smul.u32 64, %s19
      %p1339 = scmp.lt.s32.totalorder %s1338, 511
      %s1340 = scalar_select %p1339, %s1338, 511
      %p1341 = scmp.lt.s32.totalorder %s20, 0
      %s1342 = scalar_select %p1341, %s20, 0
      %s1343 = sadd.s32 %s1342, %s1340
      %s1344 = smul.addr %s1343, 4
      %s1345 = scalar_lea.vmem %s4, %s1344
      // Predicated region
      $region37: #{fused_matmul.1} parent=35 // pred_check
        %p1346 = pneg %p151
      $region38: #{fused_matmul.1} parent=35 // pred_check_branch
        %1348 = sbr.rel (%p1346) target = $region40
      $region39: #{fused_matmul.1} parent=35 // pred_region
        %s1349 = smul.u32 64, %s19
      $region40: #{fused_matmul.1} parent=35 // pred_fallthru
        _
    $region36: #{fused_matmul.1} parent=5 // pred_fallthru
      _
    %p1350 = scmp.le.s32.totalorder 2, %s10
    // Predicated region
    $region41: #{fused_matmul.1} parent=5 // pred_check
      %p1351 = pneg %p1350
    $region42: #{fused_matmul.1} parent=5 // pred_check_branch
      %1353 = sbr.rel (%p1351) target = $region44
    $region43: #{fused_matmul.1} parent=5 // pred_region
      %s1354 = ssub.s32 %s10, 2
      // Predicated region
      $region45: #{fused_matmul.1} parent=43 // pred_check
        %p1355 = pneg %p157
      $region46: #{fused_matmul.1} parent=43 // pred_check_branch
        %1357 = sbr.rel (%p1355) target = $region48
      $region47: #{fused_matmul.1} parent=43 // pred_region
        %s1358 = smul.u32 64, %s21
        %p1359 = scmp.lt.s32.totalorder %s1358, 511
        %s1360 = scalar_select %p1359, %s1358, 511
        %p1361 = scmp.lt.s32.totalorder %s22, 0
        %s1362 = scalar_select %p1361, %s22, 0
        %s1363 = sadd.s32 %s1362, %s1360
        %s1364 = smul.addr %s1363, 4
        %s1365 = scalar_lea.vmem %s4, %s1364
      $region48: #{fused_matmul.1} parent=43 // pred_fallthru
        _
    $region44: #{fused_matmul.1} parent=5 // pred_fallthru
      _
  $region6: #{fused_matmul.1} parent=0 // loop_footer
    %s14 = sadd.s32 1, %s10
  $region7: #{fused_matmul.1} parent=0 // loop_footer_branch
    %9 = sbr.rel target = $region3
  $region8: #{fused_matmul.1} parent=0 // loop_exit
    _

</llo_original>
